<compile_context>
chip_gen: v6e
topology: v6e:2x2x1
jax: 0.10.0
libtpu: 0.0.40
codegen_flags: <defaults>
</compile_context>

<pallas_src>
import math
import functools

import jax
import jax.numpy as jnp
from jax import lax
from jax.experimental import pallas as pl
from jax.experimental.pallas import tpu as pltpu


# ----------------------------------------------------------------------------
# Kernel 1: fused Q/K/V projection (fc_q, fc_k, fc_v in one launch)
# ----------------------------------------------------------------------------

def _qkv_proj_kernel(q_ref, k_ref, v_ref, w_ref, b_ref, qp_ref, kp_ref, vp_ref):
    """One (TM, 64) row tile of q/k/v -> three (TM, 64*H) projections.

    bf16 MXU inputs, f32 accumulation, bf16 outputs (intermediate activations).
    """
    def project(x_ref, o_ref, j):
        x = x_ref[...].astype(jnp.bfloat16)                    # (TM, 64)
        w = w_ref[j].astype(jnp.bfloat16)                      # (64, N)
        acc = jnp.dot(x, w, preferred_element_type=jnp.float32)
        o_ref[...] = (acc + b_ref[j]).astype(o_ref.dtype)      # bias add in f32

    project(q_ref, qp_ref, 0)
    project(k_ref, kp_ref, 1)
    project(v_ref, vp_ref, 2)


def _qkv_projection(q2d, k2d, v2d, w_stack, b_stack, *, tm=1024):
    """q2d/k2d/v2d: (M, 64); w_stack: (3, 64, N); b_stack: (3, 1, N) -> 3x (M, N) bf16.

    Tiled over M with a 'parallel' grid axis (software pipelining + megacore sharding).
    TM=1024 keeps the per-step footprint of a few MB, comfortably inside the 32 MiB
    default scoped VMEM on every generation (v7x included); sweep 512-2048 if M is large.
    """
    M, K = q2d.shape
    N = w_stack.shape[-1]
    TM = min(tm, M)
    row_spec = pl.BlockSpec((TM, K), lambda i: (i, 0))
    out_spec = pl.BlockSpec((TM, N), lambda i: (i, 0))
    out_sds = jax.ShapeDtypeStruct((M, N), jnp.bfloat16)
    return pl.pallas_call(
        _qkv_proj_kernel,
        out_shape=(out_sds, out_sds, out_sds),
        grid=(pl.cdiv(M, TM),),
        in_specs=[
            row_spec, row_spec, row_spec,
            pl.BlockSpec((3, K, N), lambda i: (0, 0, 0)),   # weights resident across steps
            pl.BlockSpec((3, 1, N), lambda i: (0, 0, 0)),   # biases resident across steps
        ],
        out_specs=(out_spec, out_spec, out_spec),
        compiler_params=pltpu.CompilerParams(
            dimension_semantics=("parallel",)),
    )(q2d, k2d, v2d, w_stack, b_stack)


# ----------------------------------------------------------------------------
# Kernel 2: per-batch multi-head attention + fused output Linear(64, 64)
# ----------------------------------------------------------------------------

def _attn_fc_kernel(q_ref, k_ref, v_ref, wo_ref, bo_ref, o_ref, *,
                    num_heads, inv_scale):
    """One batch element per grid step; all heads processed in this step.

    q/k/v blocks are (1, L, 64) bf16 where head h lives in lane slice [h*d,(h+1)*d)
    (== reference's view(...).transpose(1, 2) layout, obtained by free reshapes only).
    Softmax normalizes over the QUERY axis (torch nn.Softmax(dim=1) on (B', L, L)).
    The final fc is fused into the epilogue -> single lane-dense-as-possible (L, 64)
    store, no extra HBM round trip.
    """
    q = q_ref[0]                                  # (L, 64) bf16
    k = k_ref[0]
    v = v_ref[0]
    L, F = q.shape
    d = F // num_heads

    head_outs = []
    for h in range(num_heads):                    # static (unrolled) head loop
        lo = h * d
        qh = q[:, lo:lo + d] * inv_scale          # fold 1/scale into Q: O(L*d), exact (1/8)
        kh = k[:, lo:lo + d]
        vh = v[:, lo:lo + d]
        # u = (q/scale) @ k^T, contracting over d without an explicit transpose.
        u = lax.dot_general(qh, kh, (((1,), (1,)), ((), ())),
                            preferred_element_type=jnp.float32)      # (L, L) f32
        # softmax over axis 0 (query axis) == torch Softmax(dim=1); f32 math.
        m = jnp.max(u, axis=0, keepdims=True)
        e = jnp.exp(u - m)
        denom = jnp.sum(e, axis=0, keepdims=True)
        attn = e * pl.reciprocal(denom, approx=True)                 # EUP vrcp (free slot)
        head_outs.append(
            jnp.dot(attn.astype(jnp.bfloat16), vh,
                    preferred_element_type=jnp.float32))             # (L, d) f32

    # concat along lanes == reference's transpose(1,2).contiguous().reshape(B, -1, 64)
    merged = jnp.concatenate(head_outs, axis=-1)                     # (L, 64) f32
    out = jnp.dot(merged.astype(jnp.bfloat16),
                  wo_ref[...].astype(jnp.bfloat16),
                  preferred_element_type=jnp.float32)                # fused final fc
    o_ref[0] = (out + bo_ref[...]).astype(o_ref.dtype)

    # TODO(synk): for large L the full (L, L) score matrix must be replaced by a
    # query-tiled two-pass variant (the softmax normalizes over queries), needed to
    # stay inside v7x's 64 MiB VMEM; unnecessary at these sizes.


def _attention_fc(qh, kh, vh, wo, bo, num_heads, inv_scale):
    B, L, F = qh.shape
    kernel = functools.partial(_attn_fc_kernel,
                               num_heads=num_heads, inv_scale=inv_scale)
    blk = pl.BlockSpec((1, L, F), lambda b: (b, 0, 0))
    return pl.pallas_call(
        kernel,
        out_shape=jax.ShapeDtypeStruct((B, L, F), jnp.float32),
        grid=(B,),
        in_specs=[
            blk, blk, blk,
            pl.BlockSpec((F, F), lambda b: (0, 0)),
            pl.BlockSpec((1, F), lambda b: (0, 0)),
        ],
        out_specs=blk,
        compiler_params=pltpu.CompilerParams(
            dimension_semantics=("parallel",)),     # batch axis shards across TCs (v7x)
    )(qh, kh, vh, wo, bo.reshape(1, F))


# ----------------------------------------------------------------------------
# Module wrapper (MultiHeadAttention.forward)
# ----------------------------------------------------------------------------

def multi_head_attention(q, k, v, params, num_heads):
    """q, k, v: (B, S, 64) -> (B, S*num_heads, 64), matching the PyTorch forward."""
    B, S, F = q.shape
    assert F == 64
    H = num_heads
    L = S * H
    M = B * S
    inv_scale = 1.0 / math.sqrt(64.0)   # SelfAttention uses sqrt(64) for any non-None scale

    # --- fused Q/K/V projections (one launch) ---
    w_stack = jnp.stack([params["Wq"], params["Wk"], params["Wv"]])            # (3, 64, 64H)
    b_stack = jnp.stack([params["bq"], params["bk"], params["bv"]])[:, None]   # (3, 1, 64H)
    qp, kp, vp = _qkv_projection(q.reshape(M, F), k.reshape(M, F), v.reshape(M, F),
                                 w_stack, b_stack)

    # (B*S, 64*H) -> (B, S*H, 64): FREE row-major reshape; this IS the reference's
    # view(B, -1, H, 64//H).transpose(1, 2) layout with head h in lane slice [h*d,(h+1)*d).
    qh = qp.reshape(B, L, F)
    kh = kp.reshape(B, L, F)
    vh = vp.reshape(B, L, F)

    # --- attention over all heads + fused output Linear(64, 64) ---
    # Output layout (B, L, 64) is already the transpose(1,2).reshape(B, -1, 64) result.
    return _attention_fc(qh, kh, vh, params["Wo"], params["bo"], H, inv_scale)


# ----------------------------------------------------------------------------
# Deterministic parameter init (xavier-uniform weights, zero biases)
# ----------------------------------------------------------------------------

def _xavier_uniform(key, fan_in, fan_out):
    limit = math.sqrt(6.0 / (fan_in + fan_out))
    return jax.random.uniform(key, (fan_in, fan_out), jnp.float32, -limit, limit)


def init_params(key, num_heads):
    k1, k2, k3, k4 = jax.random.split(key, 4)
    H = num_heads
    return {
        "Wq": _xavier_uniform(k1, 64, 64 * H), "bq": jnp.zeros((64 * H,), jnp.float32),
        "Wk": _xavier_uniform(k2, 64, 64 * H), "bk": jnp.zeros((64 * H,), jnp.float32),
        "Wv": _xavier_uniform(k3, 64, 64 * H), "bv": jnp.zeros((64 * H,), jnp.float32),
        "Wo": _xavier_uniform(k4, 64, 64),     "bo": jnp.zeros((64,), jnp.float32),
    }


# ----------------------------------------------------------------------------
# Pure-JAX f32 reference (same semantics) for a sanity check
# ----------------------------------------------------------------------------

def reference(q, k, v, params, num_heads):
    B, S, F = q.shape
    H, d = num_heads, 64 // num_heads
    L = S * H
    scale = math.sqrt(64.0)

    def lin(x, w, b):
        return x @ w + b

    qp = lin(q, params["Wq"], params["bq"]).reshape(B, L, H, d).transpose(0, 2, 1, 3)
    kp = lin(k, params["Wk"], params["bk"]).reshape(B, L, H, d).transpose(0, 2, 1, 3)
    vp = lin(v, params["Wv"], params["bv"]).reshape(B, L, H, d).transpose(0, 2, 1, 3)
    qp = qp.reshape(B * H, L, d); kp = kp.reshape(B * H, L, d); vp = vp.reshape(B * H, L, d)

    u = jnp.einsum("bid,bjd->bij", qp, kp) / scale
    attn = jax.nn.softmax(u, axis=1)            # torch Softmax(dim=1) == query axis
    out = jnp.einsum("bij,bjd->bid", attn, vp)
    out = out.reshape(B, H, L, d).transpose(0, 2, 1, 3).reshape(B, L, 64)
    return lin(out, params["Wo"], params["bo"])


if __name__ == "__main__":
    B, S, H = 2, 8, 4
    key = jax.random.PRNGKey(0)
    kq, kk, kv, kp = jax.random.split(key, 4)

    q = jax.random.normal(kq, (B, S, 64), jnp.float32)
    k = jax.random.normal(kk, (B, S, 64), jnp.float32)
    v = jax.random.normal(kv, (B, S, 64), jnp.float32)
    params = init_params(kp, H)

    mha = jax.jit(multi_head_attention, static_argnums=(4,))
    out = jax.block_until_ready(mha(q, k, v, params, H))

    ref = reference(q, k, v, params, H)
    assert out.shape == (B, S * H, 64), out.shape
    # bf16 MXU inputs with f32 accumulation vs a pure-f32 reference -> 2e-2 tolerance.
    max_err = float(jnp.max(jnp.abs(out - ref)))
    assert jnp.allclose(out, ref, rtol=2e-2, atol=2e-2), f"mismatch vs reference: {max_err}"

    print("KERNEL_OK")
</pallas_src>

<mosaic_0001>
module attributes {stable_mosaic.version = 11 : i64} {
  func.func @_qkv_proj_kernel(%arg0: i32, %arg1: memref<16x64xf32, #tpu.memory_space<vmem>>, %arg2: memref<16x64xf32, #tpu.memory_space<vmem>>, %arg3: memref<16x64xf32, #tpu.memory_space<vmem>>, %arg4: memref<3x64x256xf32, #tpu.memory_space<vmem>>, %arg5: memref<3x1x256xf32, #tpu.memory_space<vmem>>, %arg6: memref<16x256xbf16, #tpu.memory_space<vmem>>, %arg7: memref<16x256xbf16, #tpu.memory_space<vmem>>, %arg8: memref<16x256xbf16, #tpu.memory_space<vmem>>) attributes {dimension_semantics = [#tpu.dimension_semantics<parallel>], iteration_bounds = array<i64: 1>, scalar_prefetch = 0 : i64, scratch_operands = 0 : i64, tpu.core_type = #tpu.core_type<tc>, window_params = [{transform_indices = @transform_0, window_bounds = array<i64: 16, 64>}, {transform_indices = @transform_1, window_bounds = array<i64: 16, 64>}, {transform_indices = @transform_2, window_bounds = array<i64: 16, 64>}, {pipeline_mode = #tpu.pipeline_mode<synchronous>, transform_indices = @transform_3, window_bounds = array<i64: 3, 64, 256>}, {pipeline_mode = #tpu.pipeline_mode<synchronous>, transform_indices = @transform_4, window_bounds = array<i64: 3, 1, 256>}, {transform_indices = @transform_5, window_bounds = array<i64: 16, 256>}, {transform_indices = @transform_6, window_bounds = array<i64: 16, 256>}, {transform_indices = @transform_7, window_bounds = array<i64: 16, 256>}]} {
    %c0 = arith.constant 0 : index
    %c0_0 = arith.constant 0 : index
    %0 = vector.load %arg1[%c0, %c0_0] : memref<16x64xf32, #tpu.memory_space<vmem>>, vector<16x64xf32>
    %1 = arith.truncf %0 : vector<16x64xf32> to vector<16x64xbf16>
    %c0_1 = arith.constant 0 : index
    %c0_2 = arith.constant 0 : index
    %c0_3 = arith.constant 0 : index
    %2 = vector.load %arg4[%c0_1, %c0_2, %c0_3] : memref<3x64x256xf32, #tpu.memory_space<vmem>>, vector<1x64x256xf32>
    %3 = vector.shape_cast %2 : vector<1x64x256xf32> to vector<64x256xf32>
    %4 = arith.truncf %3 : vector<64x256xf32> to vector<64x256xbf16>
    %cst = arith.constant dense<0.000000e+00> : vector<16x256xf32>
    %5 = tpu.matmul %1, %4, %cst {dimension_numbers = #tpu.dot_dimension_numbers<[1], [0], [0], [1], [0, 0, 1, 1], [], []>} : vector<16x64xbf16>, vector<64x256xbf16>, vector<16x256xf32> -> vector<16x256xf32>
    %c0_4 = arith.constant 0 : index
    %c0_5 = arith.constant 0 : index
    %c0_6 = arith.constant 0 : index
    %6 = vector.load %arg5[%c0_4, %c0_5, %c0_6] : memref<3x1x256xf32, #tpu.memory_space<vmem>>, vector<1x1x256xf32>
    %7 = vector.shape_cast %6 : vector<1x1x256xf32> to vector<1x256xf32>
    %8 = vector.broadcast %7 : vector<1x256xf32> to vector<16x256xf32>
    %9 = arith.addf %5, %8 : vector<16x256xf32>
    %10 = arith.truncf %9 : vector<16x256xf32> to vector<16x256xbf16>
    %c0_7 = arith.constant 0 : index
    %c0_8 = arith.constant 0 : index
    %11 = vector.load %arg6[%c0_7, %c0_8] : memref<16x256xbf16, #tpu.memory_space<vmem>>, vector<16x256xbf16>
    tpu.vector_store %arg6[%c0_7, %c0_8], %10 {strides = array<i32>} : memref<16x256xbf16, #tpu.memory_space<vmem>>, vector<16x256xbf16>,
    %c0_9 = arith.constant 0 : index
    %c0_10 = arith.constant 0 : index
    %12 = vector.load %arg2[%c0_9, %c0_10] : memref<16x64xf32, #tpu.memory_space<vmem>>, vector<16x64xf32>
    %13 = arith.truncf %12 : vector<16x64xf32> to vector<16x64xbf16>
    %c1 = arith.constant 1 : index
    %c0_11 = arith.constant 0 : index
    %c0_12 = arith.constant 0 : index
    %14 = vector.load %arg4[%c1, %c0_11, %c0_12] : memref<3x64x256xf32, #tpu.memory_space<vmem>>, vector<1x64x256xf32>
    %15 = vector.shape_cast %14 : vector<1x64x256xf32> to vector<64x256xf32>
    %16 = arith.truncf %15 : vector<64x256xf32> to vector<64x256xbf16>
    %cst_13 = arith.constant dense<0.000000e+00> : vector<16x256xf32>
    %17 = tpu.matmul %13, %16, %cst_13 {dimension_numbers = #tpu.dot_dimension_numbers<[1], [0], [0], [1], [0, 0, 1, 1], [], []>} : vector<16x64xbf16>, vector<64x256xbf16>, vector<16x256xf32> -> vector<16x256xf32>
    %c1_14 = arith.constant 1 : index
    %c0_15 = arith.constant 0 : index
    %c0_16 = arith.constant 0 : index
    %18 = vector.load %arg5[%c1_14, %c0_15, %c0_16] : memref<3x1x256xf32, #tpu.memory_space<vmem>>, vector<1x1x256xf32>
    %19 = vector.shape_cast %18 : vector<1x1x256xf32> to vector<1x256xf32>
    %20 = vector.broadcast %19 : vector<1x256xf32> to vector<16x256xf32>
    %21 = arith.addf %17, %20 : vector<16x256xf32>
    %22 = arith.truncf %21 : vector<16x256xf32> to vector<16x256xbf16>
    %c0_17 = arith.constant 0 : index
    %c0_18 = arith.constant 0 : index
    %23 = vector.load %arg7[%c0_17, %c0_18] : memref<16x256xbf16, #tpu.memory_space<vmem>>, vector<16x256xbf16>
    tpu.vector_store %arg7[%c0_17, %c0_18], %22 {strides = array<i32>} : memref<16x256xbf16, #tpu.memory_space<vmem>>, vector<16x256xbf16>,
    %c0_19 = arith.constant 0 : index
    %c0_20 = arith.constant 0 : index
    %24 = vector.load %arg3[%c0_19, %c0_20] : memref<16x64xf32, #tpu.memory_space<vmem>>, vector<16x64xf32>
    %25 = arith.truncf %24 : vector<16x64xf32> to vector<16x64xbf16>
    %c2 = arith.constant 2 : index
    %c0_21 = arith.constant 0 : index
    %c0_22 = arith.constant 0 : index
    %26 = vector.load %arg4[%c2, %c0_21, %c0_22] : memref<3x64x256xf32, #tpu.memory_space<vmem>>, vector<1x64x256xf32>
    %27 = vector.shape_cast %26 : vector<1x64x256xf32> to vector<64x256xf32>
    %28 = arith.truncf %27 : vector<64x256xf32> to vector<64x256xbf16>
    %cst_23 = arith.constant dense<0.000000e+00> : vector<16x256xf32>
    %29 = tpu.matmul %25, %28, %cst_23 {dimension_numbers = #tpu.dot_dimension_numbers<[1], [0], [0], [1], [0, 0, 1, 1], [], []>} : vector<16x64xbf16>, vector<64x256xbf16>, vector<16x256xf32> -> vector<16x256xf32>
    %c2_24 = arith.constant 2 : index
    %c0_25 = arith.constant 0 : index
    %c0_26 = arith.constant 0 : index
    %30 = vector.load %arg5[%c2_24, %c0_25, %c0_26] : memref<3x1x256xf32, #tpu.memory_space<vmem>>, vector<1x1x256xf32>
    %31 = vector.shape_cast %30 : vector<1x1x256xf32> to vector<1x256xf32>
    %32 = vector.broadcast %31 : vector<1x256xf32> to vector<16x256xf32>
    %33 = arith.addf %29, %32 : vector<16x256xf32>
    %34 = arith.truncf %33 : vector<16x256xf32> to vector<16x256xbf16>
    %c0_27 = arith.constant 0 : index
    %c0_28 = arith.constant 0 : index
    %35 = vector.load %arg8[%c0_27, %c0_28] : memref<16x256xbf16, #tpu.memory_space<vmem>>, vector<16x256xbf16>
    tpu.vector_store %arg8[%c0_27, %c0_28], %34 {strides = array<i32>} : memref<16x256xbf16, #tpu.memory_space<vmem>>, vector<16x256xbf16>,
    return
  }
  func.func @transform_0(%arg0: i32) -> (i32, i32) {
    %c0_i32 = arith.constant 0 : i32
    %c0_i32_0 = arith.constant 0 : i32
    return %arg0, %c0_i32 : i32, i32
  }
  func.func @transform_1(%arg0: i32) -> (i32, i32) {
    %c0_i32 = arith.constant 0 : i32
    %c0_i32_0 = arith.constant 0 : i32
    return %arg0, %c0_i32 : i32, i32
  }
  func.func @transform_2(%arg0: i32) -> (i32, i32) {
    %c0_i32 = arith.constant 0 : i32
    %c0_i32_0 = arith.constant 0 : i32
    return %arg0, %c0_i32 : i32, i32
  }
  func.func @transform_3(%arg0: i32) -> (i32, i32, i32) {
    %c0_i32 = arith.constant 0 : i32
    %c0_i32_0 = arith.constant 0 : i32
    %c0_i32_1 = arith.constant 0 : i32
    %c0_i32_2 = arith.constant 0 : i32
    return %c0_i32, %c0_i32_0, %c0_i32_1 : i32, i32, i32
  }
  func.func @transform_4(%arg0: i32) -> (i32, i32, i32) {
    %c0_i32 = arith.constant 0 : i32
    %c0_i32_0 = arith.constant 0 : i32
    %c0_i32_1 = arith.constant 0 : i32
    %c0_i32_2 = arith.constant 0 : i32
    return %c0_i32, %c0_i32_0, %c0_i32_1 : i32, i32, i32
  }
  func.func @transform_5(%arg0: i32) -> (i32, i32) {
    %c0_i32 = arith.constant 0 : i32
    %c0_i32_0 = arith.constant 0 : i32
    return %arg0, %c0_i32 : i32, i32
  }
  func.func @transform_6(%arg0: i32) -> (i32, i32) {
    %c0_i32 = arith.constant 0 : i32
    %c0_i32_0 = arith.constant 0 : i32
    return %arg0, %c0_i32 : i32, i32
  }
  func.func @transform_7(%arg0: i32) -> (i32, i32) {
    %c0_i32 = arith.constant 0 : i32
    %c0_i32_0 = arith.constant 0 : i32
    return %arg0, %c0_i32 : i32, i32
  }
}

module attributes {stable_mosaic.version = 11 : i64} {
  func.func @_attn_fc_kernel(%arg0: i32, %arg1: memref<1x32x64xbf16, #tpu.memory_space<vmem>>, %arg2: memref<1x32x64xbf16, #tpu.memory_space<vmem>>, %arg3: memref<1x32x64xbf16, #tpu.memory_space<vmem>>, %arg4: memref<64x64xf32, #tpu.memory_space<vmem>>, %arg5: memref<1x64xf32, #tpu.memory_space<vmem>>, %arg6: memref<1x32x64xf32, #tpu.memory_space<vmem>>) attributes {dimension_semantics = [#tpu.dimension_semantics<parallel>], iteration_bounds = array<i64: 2>, scalar_prefetch = 0 : i64, scratch_operands = 0 : i64, tpu.core_type = #tpu.core_type<tc>, window_params = [{transform_indices = @transform_0, window_bounds = array<i64: 1, 32, 64>}, {transform_indices = @transform_1, window_bounds = array<i64: 1, 32, 64>}, {transform_indices = @transform_2, window_bounds = array<i64: 1, 32, 64>}, {pipeline_mode = #tpu.pipeline_mode<synchronous>, transform_indices = @transform_3, window_bounds = array<i64: 64, 64>}, {pipeline_mode = #tpu.pipeline_mode<synchronous>, transform_indices = @transform_4, window_bounds = array<i64: 1, 64>}, {transform_indices = @transform_5, window_bounds = array<i64: 1, 32, 64>}]} {
    %c0 = arith.constant 0 : index
    %c0_0 = arith.constant 0 : index
    %c0_1 = arith.constant 0 : index
    %0 = vector.load %arg1[%c0, %c0_0, %c0_1] : memref<1x32x64xbf16, #tpu.memory_space<vmem>>, vector<1x32x64xbf16>
    %1 = vector.shape_cast %0 : vector<1x32x64xbf16> to vector<32x64xbf16>
    %c0_2 = arith.constant 0 : index
    %c0_3 = arith.constant 0 : index
    %c0_4 = arith.constant 0 : index
    %2 = vector.load %arg2[%c0_2, %c0_3, %c0_4] : memref<1x32x64xbf16, #tpu.memory_space<vmem>>, vector<1x32x64xbf16>
    %3 = vector.shape_cast %2 : vector<1x32x64xbf16> to vector<32x64xbf16>
    %c0_5 = arith.constant 0 : index
    %c0_6 = arith.constant 0 : index
    %c0_7 = arith.constant 0 : index
    %4 = vector.load %arg3[%c0_5, %c0_6, %c0_7] : memref<1x32x64xbf16, #tpu.memory_space<vmem>>, vector<1x32x64xbf16>
    %5 = vector.shape_cast %4 : vector<1x32x64xbf16> to vector<32x64xbf16>
    %6 = vector.extract_strided_slice %1 {offsets = [0, 0], sizes = [32, 16], strides = [1, 1]} : vector<32x64xbf16> to vector<32x16xbf16>
    %cst = arith.constant 1.250000e-01 : bf16
    %7 = vector.broadcast %cst : bf16 to vector<32x16xbf16>
    %8 = arith.mulf %6, %7 : vector<32x16xbf16>
    %9 = vector.extract_strided_slice %3 {offsets = [0, 0], sizes = [32, 16], strides = [1, 1]} : vector<32x64xbf16> to vector<32x16xbf16>
    %10 = vector.extract_strided_slice %5 {offsets = [0, 0], sizes = [32, 16], strides = [1, 1]} : vector<32x64xbf16> to vector<32x16xbf16>
    %cst_8 = arith.constant dense<0.000000e+00> : vector<32x32xf32>
    %11 = tpu.matmul %8, %9, %cst_8 {dimension_numbers = #tpu.dot_dimension_numbers<[1], [1], [0], [0], [0, 0, 1, 0], [], []>} : vector<32x16xbf16>, vector<32x16xbf16>, vector<32x32xf32> -> vector<32x32xf32>
    %cst_9 = arith.constant dense<0xFF800000> : vector<32xf32>
    %12 = vector.multi_reduction <maximumf>, %11, %cst_9 [0] : vector<32x32xf32> to vector<32xf32>
    %13 = vector.shape_cast %12 : vector<32xf32> to vector<1x32xf32>
    %14 = vector.broadcast %13 : vector<1x32xf32> to vector<32x32xf32>
    %15 = arith.subf %11, %14 : vector<32x32xf32>
    %16 = math.exp %15 : vector<32x32xf32>
    %cst_10 = arith.constant dense<0.000000e+00> : vector<32xf32>
    %17 = vector.multi_reduction <add>, %16, %cst_10 [0] : vector<32x32xf32> to vector<32xf32>
    %18 = vector.shape_cast %17 : vector<32xf32> to vector<1x32xf32>
    %19 = tpu.reciprocal %18 {approx = true} : vector<1x32xf32> -> vector<1x32xf32>
    %20 = vector.broadcast %19 : vector<1x32xf32> to vector<32x32xf32>
    %21 = arith.mulf %16, %20 : vector<32x32xf32>
    %22 = arith.truncf %21 : vector<32x32xf32> to vector<32x32xbf16>
    %cst_11 = arith.constant dense<0.000000e+00> : vector<32x16xf32>
    %23 = tpu.matmul %22, %10, %cst_11 {dimension_numbers = #tpu.dot_dimension_numbers<[1], [0], [0], [1], [0, 0, 1, 1], [], []>} : vector<32x32xbf16>, vector<32x16xbf16>, vector<32x16xf32> -> vector<32x16xf32>
    %24 = vector.extract_strided_slice %1 {offsets = [0, 16], sizes = [32, 16], strides = [1, 1]} : vector<32x64xbf16> to vector<32x16xbf16>
    %cst_12 = arith.constant 1.250000e-01 : bf16
    %25 = vector.broadcast %cst_12 : bf16 to vector<32x16xbf16>
    %26 = arith.mulf %24, %25 : vector<32x16xbf16>
    %27 = vector.extract_strided_slice %3 {offsets = [0, 16], sizes = [32, 16], strides = [1, 1]} : vector<32x64xbf16> to vector<32x16xbf16>
    %28 = vector.extract_strided_slice %5 {offsets = [0, 16], sizes = [32, 16], strides = [1, 1]} : vector<32x64xbf16> to vector<32x16xbf16>
    %cst_13 = arith.constant dense<0.000000e+00> : vector<32x32xf32>
    %29 = tpu.matmul %26, %27, %cst_13 {dimension_numbers = #tpu.dot_dimension_numbers<[1], [1], [0], [0], [0, 0, 1, 0], [], []>} : vector<32x16xbf16>, vector<32x16xbf16>, vector<32x32xf32> -> vector<32x32xf32>
    %cst_14 = arith.constant dense<0xFF800000> : vector<32xf32>
    %30 = vector.multi_reduction <maximumf>, %29, %cst_14 [0] : vector<32x32xf32> to vector<32xf32>
    %31 = vector.shape_cast %30 : vector<32xf32> to vector<1x32xf32>
    %32 = vector.broadcast %31 : vector<1x32xf32> to vector<32x32xf32>
    %33 = arith.subf %29, %32 : vector<32x32xf32>
    %34 = math.exp %33 : vector<32x32xf32>
    %cst_15 = arith.constant dense<0.000000e+00> : vector<32xf32>
    %35 = vector.multi_reduction <add>, %34, %cst_15 [0] : vector<32x32xf32> to vector<32xf32>
    %36 = vector.shape_cast %35 : vector<32xf32> to vector<1x32xf32>
    %37 = tpu.reciprocal %36 {approx = true} : vector<1x32xf32> -> vector<1x32xf32>
    %38 = vector.broadcast %37 : vector<1x32xf32> to vector<32x32xf32>
    %39 = arith.mulf %34, %38 : vector<32x32xf32>
    %40 = arith.truncf %39 : vector<32x32xf32> to vector<32x32xbf16>
    %cst_16 = arith.constant dense<0.000000e+00> : vector<32x16xf32>
    %41 = tpu.matmul %40, %28, %cst_16 {dimension_numbers = #tpu.dot_dimension_numbers<[1], [0], [0], [1], [0, 0, 1, 1], [], []>} : vector<32x32xbf16>, vector<32x16xbf16>, vector<32x16xf32> -> vector<32x16xf32>
    %42 = vector.extract_strided_slice %1 {offsets = [0, 32], sizes = [32, 16], strides = [1, 1]} : vector<32x64xbf16> to vector<32x16xbf16>
    %cst_17 = arith.constant 1.250000e-01 : bf16
    %43 = vector.broadcast %cst_17 : bf16 to vector<32x16xbf16>
    %44 = arith.mulf %42, %43 : vector<32x16xbf16>
    %45 = vector.extract_strided_slice %3 {offsets = [0, 32], sizes = [32, 16], strides = [1, 1]} : vector<32x64xbf16> to vector<32x16xbf16>
    %46 = vector.extract_strided_slice %5 {offsets = [0, 32], sizes = [32, 16], strides = [1, 1]} : vector<32x64xbf16> to vector<32x16xbf16>
    %cst_18 = arith.constant dense<0.000000e+00> : vector<32x32xf32>
    %47 = tpu.matmul %44, %45, %cst_18 {dimension_numbers = #tpu.dot_dimension_numbers<[1], [1], [0], [0], [0, 0, 1, 0], [], []>} : vector<32x16xbf16>, vector<32x16xbf16>, vector<32x32xf32> -> vector<32x32xf32>
    %cst_19 = arith.constant dense<0xFF800000> : vector<32xf32>
    %48 = vector.multi_reduction <maximumf>, %47, %cst_19 [0] : vector<32x32xf32> to vector<32xf32>
    %49 = vector.shape_cast %48 : vector<32xf32> to vector<1x32xf32>
    %50 = vector.broadcast %49 : vector<1x32xf32> to vector<32x32xf32>
    %51 = arith.subf %47, %50 : vector<32x32xf32>
    %52 = math.exp %51 : vector<32x32xf32>
    %cst_20 = arith.constant dense<0.000000e+00> : vector<32xf32>
    %53 = vector.multi_reduction <add>, %52, %cst_20 [0] : vector<32x32xf32> to vector<32xf32>
    %54 = vector.shape_cast %53 : vector<32xf32> to vector<1x32xf32>
    %55 = tpu.reciprocal %54 {approx = true} : vector<1x32xf32> -> vector<1x32xf32>
    %56 = vector.broadcast %55 : vector<1x32xf32> to vector<32x32xf32>
    %57 = arith.mulf %52, %56 : vector<32x32xf32>
    %58 = arith.truncf %57 : vector<32x32xf32> to vector<32x32xbf16>
    %cst_21 = arith.constant dense<0.000000e+00> : vector<32x16xf32>
    %59 = tpu.matmul %58, %46, %cst_21 {dimension_numbers = #tpu.dot_dimension_numbers<[1], [0], [0], [1], [0, 0, 1, 1], [], []>} : vector<32x32xbf16>, vector<32x16xbf16>, vector<32x16xf32> -> vector<32x16xf32>
    %60 = vector.extract_strided_slice %1 {offsets = [0, 48], sizes = [32, 16], strides = [1, 1]} : vector<32x64xbf16> to vector<32x16xbf16>
    %cst_22 = arith.constant 1.250000e-01 : bf16
    %61 = vector.broadcast %cst_22 : bf16 to vector<32x16xbf16>
    %62 = arith.mulf %60, %61 : vector<32x16xbf16>
    %63 = vector.extract_strided_slice %3 {offsets = [0, 48], sizes = [32, 16], strides = [1, 1]} : vector<32x64xbf16> to vector<32x16xbf16>
    %64 = vector.extract_strided_slice %5 {offsets = [0, 48], sizes = [32, 16], strides = [1, 1]} : vector<32x64xbf16> to vector<32x16xbf16>
    %cst_23 = arith.constant dense<0.000000e+00> : vector<32x32xf32>
    %65 = tpu.matmul %62, %63, %cst_23 {dimension_numbers = #tpu.dot_dimension_numbers<[1], [1], [0], [0], [0, 0, 1, 0], [], []>} : vector<32x16xbf16>, vector<32x16xbf16>, vector<32x32xf32> -> vector<32x32xf32>
    %cst_24 = arith.constant dense<0xFF800000> : vector<32xf32>
    %66 = vector.multi_reduction <maximumf>, %65, %cst_24 [0] : vector<32x32xf32> to vector<32xf32>
    %67 = vector.shape_cast %66 : vector<32xf32> to vector<1x32xf32>
    %68 = vector.broadcast %67 : vector<1x32xf32> to vector<32x32xf32>
    %69 = arith.subf %65, %68 : vector<32x32xf32>
    %70 = math.exp %69 : vector<32x32xf32>
    %cst_25 = arith.constant dense<0.000000e+00> : vector<32xf32>
    %71 = vector.multi_reduction <add>, %70, %cst_25 [0] : vector<32x32xf32> to vector<32xf32>
    %72 = vector.shape_cast %71 : vector<32xf32> to vector<1x32xf32>
    %73 = tpu.reciprocal %72 {approx = true} : vector<1x32xf32> -> vector<1x32xf32>
    %74 = vector.broadcast %73 : vector<1x32xf32> to vector<32x32xf32>
    %75 = arith.mulf %70, %74 : vector<32x32xf32>
    %76 = arith.truncf %75 : vector<32x32xf32> to vector<32x32xbf16>
    %cst_26 = arith.constant dense<0.000000e+00> : vector<32x16xf32>
    %77 = tpu.matmul %76, %64, %cst_26 {dimension_numbers = #tpu.dot_dimension_numbers<[1], [0], [0], [1], [0, 0, 1, 1], [], []>} : vector<32x32xbf16>, vector<32x16xbf16>, vector<32x16xf32> -> vector<32x16xf32>
    %78 = tpu.concatenate %23, %41, %59, %77 in 1 : vector<32x16xf32>, vector<32x16xf32>, vector<32x16xf32>, vector<32x16xf32> -> vector<32x64xf32>
    %79 = arith.truncf %78 : vector<32x64xf32> to vector<32x64xbf16>
    %c0_27 = arith.constant 0 : index
    %c0_28 = arith.constant 0 : index
    %80 = vector.load %arg4[%c0_27, %c0_28] : memref<64x64xf32, #tpu.memory_space<vmem>>, vector<64x64xf32>
    %81 = arith.truncf %80 : vector<64x64xf32> to vector<64x64xbf16>
    %cst_29 = arith.constant dense<0.000000e+00> : vector<32x64xf32>
    %82 = tpu.matmul %79, %81, %cst_29 {dimension_numbers = #tpu.dot_dimension_numbers<[1], [0], [0], [1], [0, 0, 1, 1], [], []>} : vector<32x64xbf16>, vector<64x64xbf16>, vector<32x64xf32> -> vector<32x64xf32>
    %c0_30 = arith.constant 0 : index
    %c0_31 = arith.constant 0 : index
    %83 = vector.load %arg5[%c0_30, %c0_31] : memref<1x64xf32, #tpu.memory_space<vmem>>, vector<1x64xf32>
    %84 = vector.broadcast %83 : vector<1x64xf32> to vector<32x64xf32>
    %85 = arith.addf %82, %84 : vector<32x64xf32>
    %c0_32 = arith.constant 0 : index
    %c0_33 = arith.constant 0 : index
    %c0_34 = arith.constant 0 : index
    %86 = vector.load %arg6[%c0_32, %c0_33, %c0_34] : memref<1x32x64xf32, #tpu.memory_space<vmem>>, vector<1x32x64xf32>
    %87 = vector.shape_cast %86 : vector<1x32x64xf32> to vector<32x64xf32>
    %88 = vector.shape_cast %85 : vector<32x64xf32> to vector<1x32x64xf32>
    tpu.vector_store %arg6[%c0_32, %c0_33, %c0_34], %88 {strides = array<i32>} : memref<1x32x64xf32, #tpu.memory_space<vmem>>, vector<1x32x64xf32>,
    return
  }
  func.func @transform_0(%arg0: i32) -> (i32, i32, i32) {
    %c0_i32 = arith.constant 0 : i32
    %c0_i32_0 = arith.constant 0 : i32
    %c0_i32_1 = arith.constant 0 : i32
    return %arg0, %c0_i32, %c0_i32_0 : i32, i32, i32
  }
  func.func @transform_1(%arg0: i32) -> (i32, i32, i32) {
    %c0_i32 = arith.constant 0 : i32
    %c0_i32_0 = arith.constant 0 : i32
    %c0_i32_1 = arith.constant 0 : i32
    return %arg0, %c0_i32, %c0_i32_0 : i32, i32, i32
  }
  func.func @transform_2(%arg0: i32) -> (i32, i32, i32) {
    %c0_i32 = arith.constant 0 : i32
    %c0_i32_0 = arith.constant 0 : i32
    %c0_i32_1 = arith.constant 0 : i32
    return %arg0, %c0_i32, %c0_i32_0 : i32, i32, i32
  }
  func.func @transform_3(%arg0: i32) -> (i32, i32) {
    %c0_i32 = arith.constant 0 : i32
    %c0_i32_0 = arith.constant 0 : i32
    %c0_i32_1 = arith.constant 0 : i32
    return %c0_i32, %c0_i32_0 : i32, i32
  }
  func.func @transform_4(%arg0: i32) -> (i32, i32) {
    %c0_i32 = arith.constant 0 : i32
    %c0_i32_0 = arith.constant 0 : i32
    %c0_i32_1 = arith.constant 0 : i32
    return %c0_i32, %c0_i32_0 : i32, i32
  }
  func.func @transform_5(%arg0: i32) -> (i32, i32, i32) {
    %c0_i32 = arith.constant 0 : i32
    %c0_i32_0 = arith.constant 0 : i32
    %c0_i32_1 = arith.constant 0 : i32
    return %arg0, %c0_i32, %c0_i32_0 : i32, i32, i32
  }
}

</mosaic_0001>

<llo_original>
// kernel: multi_head_attention.2
$region0: #{multi_head_attention.2}
  #allocation0 [shape = 'u32[]', space=smem, size = 0x4, offset = 0x4, fixed_abs, tag = 'smem constant byte address 0x4 - core index']
  #allocation1 [shape = 'u32[144,128]{1,0:T(1,128)}', space=vmem, size = 0x12000, scoped, tag = 'internal scratch']
  %s0 = inlined_call_operand.vmem [shape: f32[16,64], index: 0, kind: input, shape index: {}]
  %s1 = inlined_call_operand.vmem [shape: f32[16,64], index: 1, kind: input, shape index: {}]
  %s2 = inlined_call_operand.vmem [shape: f32[16,64], index: 2, kind: input, shape index: {}]
  %s3 = inlined_call_operand.vmem [shape: f32[3,64,256], index: 3, kind: input, shape index: {}]
  %s4 = inlined_call_operand.vmem [shape: f32[3,1,256], index: 4, kind: input, shape index: {}]
  %s5 = inlined_call_operand.vmem [shape: bf16[16,256], index: 5, kind: output, shape index: {0}]
  %s6 = inlined_call_operand.vmem [shape: bf16[16,256], index: 6, kind: output, shape index: {1}]
  %s7 = inlined_call_operand.vmem [shape: bf16[16,256], index: 7, kind: output, shape index: {2}]
  %8 = xla_tuple %s5, %s6, %s7
  %s9 = sld [smem:[#allocation0]]
  $region46: #{multi_head_attention.2} parent=0
    _
  %s11 = ssub.s32 1, %s9
  %s12 = scalar_select 0, %s11, %s9
  // Predicated region
  $region2: #{multi_head_attention.2} parent=0 // pred_check
    _
  $region3: #{multi_head_attention.2} parent=0 // pred_check_branch
    %14 = sbr.rel (0) target = $region5
  $region4: #{multi_head_attention.2} parent=0 // pred_region
    _
  $region5: #{multi_head_attention.2} parent=0 // pred_fallthru
    _
  // Predicated region
  $region6: #{multi_head_attention.2} parent=0 // pred_check
    _
  $region7: #{multi_head_attention.2} parent=0 // pred_check_branch
    %16 = sbr.rel (0) target = $region9
  $region8: #{multi_head_attention.2} parent=0 // pred_region
    _
  $region9: #{multi_head_attention.2} parent=0 // pred_fallthru
    _
  // Predicated region
  $region10: #{multi_head_attention.2} parent=0 // pred_check
    _
  $region11: #{multi_head_attention.2} parent=0 // pred_check_branch
    %18 = sbr.rel (0) target = $region13
  $region12: #{multi_head_attention.2} parent=0 // pred_region
    _
  $region13: #{multi_head_attention.2} parent=0 // pred_fallthru
    _
  // Predicated region
  $region14: #{multi_head_attention.2} parent=0 // pred_check
    _
  $region15: #{multi_head_attention.2} parent=0 // pred_check_branch
    %20 = sbr.rel (0) target = $region17
  $region16: #{multi_head_attention.2} parent=0 // pred_region
    _
  $region17: #{multi_head_attention.2} parent=0 // pred_fallthru
    _
  // Predicated region
  $region18: #{multi_head_attention.2} parent=0 // pred_check
    _
  $region19: #{multi_head_attention.2} parent=0 // pred_check_branch
    %22 = sbr.rel (0) target = $region21
  $region20: #{multi_head_attention.2} parent=0 // pred_region
    _
  $region21: #{multi_head_attention.2} parent=0 // pred_fallthru
    _
  %v24 = vld [vmem:[%s0] sm:$0xff]
  %v25 = vld [vmem:[%s0 + $0x8] sm:$0xff]
  %v26 = vpack.c.bf16 %v25, %v24
  %v27 = vld [vmem:[%s3] sm:$0xff]
  %v28 = vld [vmem:[%s3 + $0x8] sm:$0xff]
  %v29 = vld [vmem:[%s3 + $0x10] sm:$0xff]
  %v30 = vld [vmem:[%s3 + $0x18] sm:$0xff]
  %v31 = vld [vmem:[%s3 + $0x20] sm:$0xff]
  %v32 = vld [vmem:[%s3 + $0x28] sm:$0xff]
  %v33 = vld [vmem:[%s3 + $0x30] sm:$0xff]
  %v34 = vld [vmem:[%s3 + $0x38] sm:$0xff]
  %v35 = vld [vmem:[%s3 + $0x40] sm:$0xff]
  %v36 = vld [vmem:[%s3 + $0x48] sm:$0xff]
  %v37 = vld [vmem:[%s3 + $0x50] sm:$0xff]
  %v38 = vld [vmem:[%s3 + $0x58] sm:$0xff]
  %v39 = vld [vmem:[%s3 + $0x60] sm:$0xff]
  %v40 = vld [vmem:[%s3 + $0x68] sm:$0xff]
  %v41 = vld [vmem:[%s3 + $0x70] sm:$0xff]
  %v42 = vld [vmem:[%s3 + $0x78] sm:$0xff]
  %v43 = vpack.c.bf16 %v29, %v27
  %v44 = vpack.c.bf16 %v30, %v28
  %v45 = vpack.c.bf16 %v33, %v31
  %v46 = vpack.c.bf16 %v34, %v32
  %v47 = vpack.c.bf16 %v37, %v35
  %v48 = vpack.c.bf16 %v38, %v36
  %v49 = vpack.c.bf16 %v41, %v39
  %v50 = vpack.c.bf16 %v42, %v40
  %v51 = vld [vmem:[%s4] sm:$0x3]
  %v53 = vlaneseq
  %v54 = vshrl.u32 %v53, 7
  %v55 = vsub.s32 0, %v54
  %v56 = vrot.slane %v51, %v55
  %v57 = vlaneseq
  %v58 = vshrl.u32 %v57, 7
  %v59 = vsub.s32 1, %v58
  %v60 = vrot.slane %v51, %v59
  %vm63 = vcmask 523264
  %v65 = vsel %vm63, %v26, 0
  %67 = vmatprep.subr.bf16.mxu0 0
  %68 = vmatpush1.bf16.msra.mxu0 0
  %69 = vmatprep.subr.bf16.mxu0 0
  %70 = vmatpush1.bf16.msra.mxu0 0
  %71 = vmatprep.subr.bf16.mxu0 0
  %72 = vmatpush1.bf16.msra.mxu0 0
  %73 = vmatprep.subr.bf16.mxu0 0
  %74 = vmatpush1.bf16.msra.mxu0 0
  %75 = vmatprep.subr.bf16.mxu0 %v50
  %76 = vmatpush1.bf16.msra.mxu0 %v49
  %77 = vmatprep.subr.bf16.mxu0 %v48
  %78 = vmatpush1.bf16.msra.mxu0 %v47
  %79 = vmatprep.subr.bf16.mxu0 %v46
  %80 = vmatpush1.bf16.msra.mxu0 %v45
  %81 = vmatprep.subr.bf16.mxu0 %v44
  %82 = vmatpush1.bf16.msra.mxu0 %v43
  %83 = vmatprep.subr.bf16.mxu0 0
  %84 = vmatpush2.bf16.msra.mxu0 0
  %85 = vmatprep.subr.bf16.mxu0 0
  %86 = vmatpush2.bf16.msra.mxu0 0
  %87 = vmatprep.subr.bf16.mxu0 0
  %88 = vmatpush2.bf16.msra.mxu0 0
  %89 = vmatprep.subr.bf16.mxu0 0
  %90 = vmatpush2.bf16.msra.mxu0 0
  %91 = vmatprep.subr.bf16.mxu0 0
  %92 = vmatpush2.bf16.msra.mxu0 0
  %93 = vmatprep.subr.bf16.mxu0 0
  %94 = vmatpush2.bf16.msra.mxu0 0
  %95 = vmatprep.subr.bf16.mxu0 0
  %96 = vmatpush2.bf16.msra.mxu0 0
  %97 = vmatprep.subr.bf16.mxu0 0
  %98 = vmatpush2.bf16.msra.mxu0 0
  %99 = vmatprep.mubr.bf16.mxu0 0
  %100 = vmatmul.mubr.bf16.gmra.mxu0 %v65
  %v101 = vpop.f32.mrf.mxu0
  %v102 = vadd.f32 %v56, %v101
  %v103 = vpop.f32.mrf.mxu0
  %v104 = vadd.f32 %v60, %v103
  %v105 = vpop.f32.mrf.mxu0
  %v106 = vadd.f32 %v56, %v105
  %v107 = vpop.f32.mrf.mxu0
  %v108 = vadd.f32 %v60, %v107
  %109 = vdwg.mxu0
  %v110 = vpack.c.bf16 %v106, %v102
  %v111 = vpack.c.bf16 %v108, %v104
  %v114 = vunpack.c.l.b16 %v110
  %v115 = vunpack.c.l.b16 %v111
  %v116 = vunpack.c.h.b16 %v110
  %v117 = vunpack.c.h.b16 %v111
  %v118 = vpack.c.b16 %v115, %v114
  %v119 = vpack.c.b16 %v117, %v116
  %122 = vst [vmem:[%s5] sm:$0xff] %v118
  %123 = vst [vmem:[%s5 + $0x8] sm:$0xff] %v119
  %v124 = vld [vmem:[%s1] sm:$0xff]
  %v125 = vld [vmem:[%s1 + $0x8] sm:$0xff]
  %v126 = vpack.c.bf16 %v125, %v124
  %s127 = scalar_lea.vmem %s3, 128
  %v128 = vld [vmem:[%s127] sm:$0xff]
  %v129 = vld [vmem:[%s127 + $0x8] sm:$0xff]
  %v130 = vld [vmem:[%s127 + $0x10] sm:$0xff]
  %v131 = vld [vmem:[%s127 + $0x18] sm:$0xff]
  %v132 = vld [vmem:[%s127 + $0x20] sm:$0xff]
  %v133 = vld [vmem:[%s127 + $0x28] sm:$0xff]
  %v134 = vld [vmem:[%s127 + $0x30] sm:$0xff]
  %v135 = vld [vmem:[%s127 + $0x38] sm:$0xff]
  %v136 = vld [vmem:[%s127 + $0x40] sm:$0xff]
  %v137 = vld [vmem:[%s127 + $0x48] sm:$0xff]
  %v138 = vld [vmem:[%s127 + $0x50] sm:$0xff]
  %v139 = vld [vmem:[%s127 + $0x58] sm:$0xff]
  %v140 = vld [vmem:[%s127 + $0x60] sm:$0xff]
  %v141 = vld [vmem:[%s127 + $0x68] sm:$0xff]
  %v142 = vld [vmem:[%s127 + $0x70] sm:$0xff]
  %v143 = vld [vmem:[%s127 + $0x78] sm:$0xff]
  %v144 = vpack.c.bf16 %v130, %v128
  %v145 = vpack.c.bf16 %v131, %v129
  %v146 = vpack.c.bf16 %v134, %v132
  %v147 = vpack.c.bf16 %v135, %v133
  %v148 = vpack.c.bf16 %v138, %v136
  %v149 = vpack.c.bf16 %v139, %v137
  %v150 = vpack.c.bf16 %v142, %v140
  %v151 = vpack.c.bf16 %v143, %v141
  %s152 = scalar_lea.vmem %s4, 2
  %v153 = vld [vmem:[%s152] sm:$0x3]
  %v155 = vlaneseq
  %v156 = vshrl.u32 %v155, 7
  %v157 = vsub.s32 0, %v156
  %v158 = vrot.slane %v153, %v157
  %v159 = vlaneseq
  %v160 = vshrl.u32 %v159, 7
  %v161 = vsub.s32 1, %v160
  %v162 = vrot.slane %v153, %v161
  %v166 = vsel %vm63, %v126, 0
  %168 = vmatprep.subr.bf16.mxu0 0
  %169 = vmatpush1.bf16.msra.mxu0 0
  %170 = vmatprep.subr.bf16.mxu0 0
  %171 = vmatpush1.bf16.msra.mxu0 0
  %172 = vmatprep.subr.bf16.mxu0 0
  %173 = vmatpush1.bf16.msra.mxu0 0
  %174 = vmatprep.subr.bf16.mxu0 0
  %175 = vmatpush1.bf16.msra.mxu0 0
  %176 = vmatprep.subr.bf16.mxu0 %v151
  %177 = vmatpush1.bf16.msra.mxu0 %v150
  %178 = vmatprep.subr.bf16.mxu0 %v149
  %179 = vmatpush1.bf16.msra.mxu0 %v148
  %180 = vmatprep.subr.bf16.mxu0 %v147
  %181 = vmatpush1.bf16.msra.mxu0 %v146
  %182 = vmatprep.subr.bf16.mxu0 %v145
  %183 = vmatpush1.bf16.msra.mxu0 %v144
  %184 = vmatprep.subr.bf16.mxu0 0
  %185 = vmatpush2.bf16.msra.mxu0 0
  %186 = vmatprep.subr.bf16.mxu0 0
  %187 = vmatpush2.bf16.msra.mxu0 0
  %188 = vmatprep.subr.bf16.mxu0 0
  %189 = vmatpush2.bf16.msra.mxu0 0
  %190 = vmatprep.subr.bf16.mxu0 0
  %191 = vmatpush2.bf16.msra.mxu0 0
  %192 = vmatprep.subr.bf16.mxu0 0
  %193 = vmatpush2.bf16.msra.mxu0 0
  %194 = vmatprep.subr.bf16.mxu0 0
  %195 = vmatpush2.bf16.msra.mxu0 0
  %196 = vmatprep.subr.bf16.mxu0 0
  %197 = vmatpush2.bf16.msra.mxu0 0
  %198 = vmatprep.subr.bf16.mxu0 0
  %199 = vmatpush2.bf16.msra.mxu0 0
  %200 = vmatprep.mubr.bf16.mxu0 0
  %201 = vmatmul.mubr.bf16.gmra.mxu0 %v166
  %v202 = vpop.f32.mrf.mxu0
  %v203 = vadd.f32 %v158, %v202
  %v204 = vpop.f32.mrf.mxu0
  %v205 = vadd.f32 %v162, %v204
  %v206 = vpop.f32.mrf.mxu0
  %v207 = vadd.f32 %v158, %v206
  %v208 = vpop.f32.mrf.mxu0
  %v209 = vadd.f32 %v162, %v208
  %210 = vdwg.mxu0
  %v211 = vpack.c.bf16 %v207, %v203
  %v212 = vpack.c.bf16 %v209, %v205
  %v215 = vunpack.c.l.b16 %v211
  %v216 = vunpack.c.l.b16 %v212
  %v217 = vunpack.c.h.b16 %v211
  %v218 = vunpack.c.h.b16 %v212
  %v219 = vpack.c.b16 %v216, %v215
  %v220 = vpack.c.b16 %v218, %v217
  %223 = vst [vmem:[%s6] sm:$0xff] %v219
  %224 = vst [vmem:[%s6 + $0x8] sm:$0xff] %v220
  %v225 = vld [vmem:[%s2] sm:$0xff]
  %v226 = vld [vmem:[%s2 + $0x8] sm:$0xff]
  %v227 = vpack.c.bf16 %v226, %v225
  %s228 = scalar_lea.vmem %s3, 256
  %v229 = vld [vmem:[%s228] sm:$0xff]
  %v230 = vld [vmem:[%s228 + $0x8] sm:$0xff]
  %v231 = vld [vmem:[%s228 + $0x10] sm:$0xff]
  %v232 = vld [vmem:[%s228 + $0x18] sm:$0xff]
  %v233 = vld [vmem:[%s228 + $0x20] sm:$0xff]
  %v234 = vld [vmem:[%s228 + $0x28] sm:$0xff]
  %v235 = vld [vmem:[%s228 + $0x30] sm:$0xff]
  %v236 = vld [vmem:[%s228 + $0x38] sm:$0xff]
  %v237 = vld [vmem:[%s228 + $0x40] sm:$0xff]
  %v238 = vld [vmem:[%s228 + $0x48] sm:$0xff]
  %v239 = vld [vmem:[%s228 + $0x50] sm:$0xff]
  %v240 = vld [vmem:[%s228 + $0x58] sm:$0xff]
  %v241 = vld [vmem:[%s228 + $0x60] sm:$0xff]
  %v242 = vld [vmem:[%s228 + $0x68] sm:$0xff]
  %v243 = vld [vmem:[%s228 + $0x70] sm:$0xff]
  %v244 = vld [vmem:[%s228 + $0x78] sm:$0xff]
  %v245 = vpack.c.bf16 %v231, %v229
  %v246 = vpack.c.bf16 %v232, %v230
  %v247 = vpack.c.bf16 %v235, %v233
  %v248 = vpack.c.bf16 %v236, %v234
  %v249 = vpack.c.bf16 %v239, %v237
  %v250 = vpack.c.bf16 %v240, %v238
  %v251 = vpack.c.bf16 %v243, %v241
  %v252 = vpack.c.bf16 %v244, %v242
  %s253 = scalar_lea.vmem %s4, 4
  %v254 = vld [vmem:[%s253] sm:$0x3]
  %v256 = vlaneseq
  %v257 = vshrl.u32 %v256, 7
  %v258 = vsub.s32 0, %v257
  %v259 = vrot.slane %v254, %v258
  %v260 = vlaneseq
  %v261 = vshrl.u32 %v260, 7
  %v262 = vsub.s32 1, %v261
  %v263 = vrot.slane %v254, %v262
  %v267 = vsel %vm63, %v227, 0
  %269 = vmatprep.subr.bf16.mxu0 0
  %270 = vmatpush1.bf16.msra.mxu0 0
  %271 = vmatprep.subr.bf16.mxu0 0
  %272 = vmatpush1.bf16.msra.mxu0 0
  %273 = vmatprep.subr.bf16.mxu0 0
  %274 = vmatpush1.bf16.msra.mxu0 0
  %275 = vmatprep.subr.bf16.mxu0 0
  %276 = vmatpush1.bf16.msra.mxu0 0
  %277 = vmatprep.subr.bf16.mxu0 %v252
  %278 = vmatpush1.bf16.msra.mxu0 %v251
  %279 = vmatprep.subr.bf16.mxu0 %v250
  %280 = vmatpush1.bf16.msra.mxu0 %v249
  %281 = vmatprep.subr.bf16.mxu0 %v248
  %282 = vmatpush1.bf16.msra.mxu0 %v247
  %283 = vmatprep.subr.bf16.mxu0 %v246
  %284 = vmatpush1.bf16.msra.mxu0 %v245
  %285 = vmatprep.subr.bf16.mxu0 0
  %286 = vmatpush2.bf16.msra.mxu0 0
  %287 = vmatprep.subr.bf16.mxu0 0
  %288 = vmatpush2.bf16.msra.mxu0 0
  %289 = vmatprep.subr.bf16.mxu0 0
  %290 = vmatpush2.bf16.msra.mxu0 0
  %291 = vmatprep.subr.bf16.mxu0 0
  %292 = vmatpush2.bf16.msra.mxu0 0
  %293 = vmatprep.subr.bf16.mxu0 0
  %294 = vmatpush2.bf16.msra.mxu0 0
  %295 = vmatprep.subr.bf16.mxu0 0
  %296 = vmatpush2.bf16.msra.mxu0 0
  %297 = vmatprep.subr.bf16.mxu0 0
  %298 = vmatpush2.bf16.msra.mxu0 0
  %299 = vmatprep.subr.bf16.mxu0 0
  %300 = vmatpush2.bf16.msra.mxu0 0
  %301 = vmatprep.mubr.bf16.mxu0 0
  %302 = vmatmul.mubr.bf16.gmra.mxu0 %v267
  %v303 = vpop.f32.mrf.mxu0
  %v304 = vadd.f32 %v259, %v303
  %v305 = vpop.f32.mrf.mxu0
  %v306 = vadd.f32 %v263, %v305
  %v307 = vpop.f32.mrf.mxu0
  %v308 = vadd.f32 %v259, %v307
  %v309 = vpop.f32.mrf.mxu0
  %v310 = vadd.f32 %v263, %v309
  %311 = vdwg.mxu0
  %v312 = vpack.c.bf16 %v308, %v304
  %v313 = vpack.c.bf16 %v310, %v306
  %v316 = vunpack.c.l.b16 %v312
  %v317 = vunpack.c.l.b16 %v313
  %v318 = vunpack.c.h.b16 %v312
  %v319 = vunpack.c.h.b16 %v313
  %v320 = vpack.c.b16 %v317, %v316
  %v321 = vpack.c.b16 %v319, %v318
  %324 = vst [vmem:[%s7] sm:$0xff] %v320
  %325 = vst [vmem:[%s7 + $0x8] sm:$0xff] %v321
  // Predicated region
  $region22: #{multi_head_attention.2} parent=0 // pred_check
    _
  $region23: #{multi_head_attention.2} parent=0 // pred_check_branch
    %327 = sbr.rel (0) target = $region25
  $region24: #{multi_head_attention.2} parent=0 // pred_region
    _
  $region25: #{multi_head_attention.2} parent=0 // pred_fallthru
    _
  // Predicated region
  $region26: #{multi_head_attention.2} parent=0 // pred_check
    _
  $region27: #{multi_head_attention.2} parent=0 // pred_check_branch
    %329 = sbr.rel (0) target = $region29
  $region28: #{multi_head_attention.2} parent=0 // pred_region
    _
  $region29: #{multi_head_attention.2} parent=0 // pred_fallthru
    _
  // Predicated region
  $region30: #{multi_head_attention.2} parent=0 // pred_check
    _
  $region31: #{multi_head_attention.2} parent=0 // pred_check_branch
    %331 = sbr.rel (0) target = $region33
  $region32: #{multi_head_attention.2} parent=0 // pred_region
    _
  $region33: #{multi_head_attention.2} parent=0 // pred_fallthru
    _
  // Predicated region
  $region34: #{multi_head_attention.2} parent=0 // pred_check
    _
  $region35: #{multi_head_attention.2} parent=0 // pred_check_branch
    %333 = sbr.rel (0) target = $region37
  $region36: #{multi_head_attention.2} parent=0 // pred_region
    _
  $region37: #{multi_head_attention.2} parent=0 // pred_fallthru
    _
  // Predicated region
  $region38: #{multi_head_attention.2} parent=0 // pred_check
    _
  $region39: #{multi_head_attention.2} parent=0 // pred_check_branch
    %335 = sbr.rel (0) target = $region41
  $region40: #{multi_head_attention.2} parent=0 // pred_region
    _
  $region41: #{multi_head_attention.2} parent=0 // pred_fallthru
    _
  // Predicated region
  $region42: #{multi_head_attention.2} parent=0 // pred_check
    _
  $region43: #{multi_head_attention.2} parent=0 // pred_check_branch
    %337 = sbr.rel (0) target = $region45
  $region44: #{multi_head_attention.2} parent=0 // pred_region
    _
  $region45: #{multi_head_attention.2} parent=0 // pred_fallthru
    _

// kernel: multi_head_attention.3
$region0: #{multi_head_attention.3}
  #allocation0 [shape = 'u32[]', space=smem, size = 0x4, offset = 0x4, fixed_abs, tag = 'smem constant byte address 0x4 - core index']
  #allocation1 [shape = 'u32[144,128]{1,0:T(1,128)}', space=vmem, size = 0x12000, scoped, tag = 'internal scratch']
  %s0 = inlined_call_operand.vmem [shape: bf16[2,32,64], index: 0, kind: input, shape index: {}]
  %s1 = inlined_call_operand.vmem [shape: bf16[2,32,64], index: 1, kind: input, shape index: {}]
  %s2 = inlined_call_operand.vmem [shape: bf16[2,32,64], index: 2, kind: input, shape index: {}]
  %s3 = inlined_call_operand.vmem [shape: f32[64,64], index: 3, kind: input, shape index: {}]
  %s4 = inlined_call_operand.vmem [shape: f32[1,64], index: 4, kind: input, shape index: {}]
  %s5 = inlined_call_operand.hbm [shape: f32[2,32,64], index: 5, kind: output, shape index: {}]
  %s6 = sld [smem:[#allocation0]]
  $region53: #{multi_head_attention.3} parent=0
    _
  %s8 = ssub.s32 1, %s6
  %s9 = scalar_select 0, %s8, %s6
  $region1: #{multi_head_attention.3} parent=0
    #allocation2 [shape = 'u8[32768]{0}', space=vmem, size = 0x8000, scoped, tag = 'output window, operand 0']
    #allocation3 [shape = 's32[2]{0}', space=sflag, size = 0x8, scoped, tag = 'scoped memory for multi_head_attention.3']
    %10 = vsyncpa [#allocation3], 0
    %s11 = scalar_lea.sflag [#allocation3], 1
    %12 = vsyncpa %s11, 0
    loop: start=0, step=1, limit=4
    $region2: #{multi_head_attention.3} parent=1 // loop_pre_header
      _
    $region3: #{multi_head_attention.3} parent=1 // loop_header
      %s14 = sphi 0, %s18
      %p15 = scmp.ge.s32.totalorder %s14, 4
      %s24 = sphi 0, %s26
      %s27 = sphi 0, %s24
      %s28 = sphi 0, %s27
      %s44 = sphi 0, %s28
      %s50 = sphi 0, %s52
      %s53 = sphi 0, %s50
      %s54 = sphi 0, %s53
      %s70 = sphi 0, %s54
      %s76 = sphi 0, %s78
      %s79 = sphi 0, %s76
      %s80 = sphi 0, %s79
      %s96 = sphi 0, %s80
      %s100 = sphi 0, %s100
      %s102 = sphi 0, %s100
      %s103 = sphi 0, %s102
      %s117 = sphi 0, %s103
      %s121 = sphi 0, %s121
      %s123 = sphi 0, %s121
      %s124 = sphi 0, %s123
      %s138 = sphi 0, %s124
      %s144 = sphi 0, %s146
      %s147 = sphi 0, %s144
      %s148 = sphi 0, %s147
      %s164 = sphi 0, %s148
    $region4: #{multi_head_attention.3} parent=1 // loop_header_branch
      %17 = sbr.rel (%p15) target = $region8
    $region5: #{multi_head_attention.3} parent=1 // loop_body
      %s19 = ssub.s32 %s14, 1
      %s20 = ssub.s32 %s14, 2
      %s21 = sadd.s32 %s14, 1
      %s22 = ssub.s32 %s14, %s21
      %p23 = scmp.eq.s32.totalorder %s22, 0
      %s25 = sadd.s32 %s24, 1
      %s26 = scalar_select %p23, %s24, %s25
      %p29 = pneg %p23
      %p30 = scmp.eq.s32.totalorder %s14, 1
      %p31 = por %p29, %p30
      %p32 = scmp.ne.s32.totalorder %s24, %s27
      %p33 = scmp.eq.s32.totalorder %s14, 0
      %p34 = por %p32, %p33
      %p35 = scmp.ne.s32.totalorder %s24, %s27
      %p36 = scmp.eq.s32.totalorder %s19, 1
      %p37 = por %p35, %p36
      %p38 = scmp.ne.s32.totalorder %s27, %s28
      %p39 = scmp.eq.s32.totalorder %s19, 0
      %p40 = por %p38, %p39
      %p41 = scmp.ne.s32.totalorder %s27, %s28
      %p42 = scmp.eq.s32.totalorder %s20, 1
      %p43 = por %p41, %p42
      %p45 = scmp.ne.s32.totalorder %s28, %s44
      %p46 = scmp.eq.s32.totalorder %s20, 0
      %p47 = por %p45, %p46
      %s48 = ssub.s32 %s14, %s21
      %p49 = scmp.eq.s32.totalorder %s48, 0
      %s51 = sadd.s32 %s50, 1
      %s52 = scalar_select %p49, %s50, %s51
      %p55 = pneg %p49
      %p56 = scmp.eq.s32.totalorder %s14, 1
      %p57 = por %p55, %p56
      %p58 = scmp.ne.s32.totalorder %s50, %s53
      %p59 = scmp.eq.s32.totalorder %s14, 0
      %p60 = por %p58, %p59
      %p61 = scmp.ne.s32.totalorder %s50, %s53
      %p62 = scmp.eq.s32.totalorder %s19, 1
      %p63 = por %p61, %p62
      %p64 = scmp.ne.s32.totalorder %s53, %s54
      %p65 = scmp.eq.s32.totalorder %s19, 0
      %p66 = por %p64, %p65
      %p67 = scmp.ne.s32.totalorder %s53, %s54
      %p68 = scmp.eq.s32.totalorder %s20, 1
      %p69 = por %p67, %p68
      %p71 = scmp.ne.s32.totalorder %s54, %s70
      %p72 = scmp.eq.s32.totalorder %s20, 0
      %p73 = por %p71, %p72
      %s74 = ssub.s32 %s14, %s21
      %p75 = scmp.eq.s32.totalorder %s74, 0
      %s77 = sadd.s32 %s76, 1
      %s78 = scalar_select %p75, %s76, %s77
      %p81 = pneg %p75
      %p82 = scmp.eq.s32.totalorder %s14, 1
      %p83 = por %p81, %p82
      %p84 = scmp.ne.s32.totalorder %s76, %s79
      %p85 = scmp.eq.s32.totalorder %s14, 0
      %p86 = por %p84, %p85
      %p87 = scmp.ne.s32.totalorder %s76, %s79
      %p88 = scmp.eq.s32.totalorder %s19, 1
      %p89 = por %p87, %p88
      %p90 = scmp.ne.s32.totalorder %s79, %s80
      %p91 = scmp.eq.s32.totalorder %s19, 0
      %p92 = por %p90, %p91
      %p93 = scmp.ne.s32.totalorder %s79, %s80
      %p94 = scmp.eq.s32.totalorder %s20, 1
      %p95 = por %p93, %p94
      %p97 = scmp.ne.s32.totalorder %s80, %s96
      %p98 = scmp.eq.s32.totalorder %s20, 0
      %p99 = por %p97, %p98
      %s101 = sadd.s32 %s100, 1
      %p104 = scmp.eq.s32.totalorder %s14, 1
      %p105 = scmp.ne.s32.totalorder %s100, %s102
      %p106 = scmp.eq.s32.totalorder %s14, 0
      %p107 = por %p105, %p106
      %p108 = scmp.ne.s32.totalorder %s100, %s102
      %p109 = scmp.eq.s32.totalorder %s19, 1
      %p110 = por %p108, %p109
      %p111 = scmp.ne.s32.totalorder %s102, %s103
      %p112 = scmp.eq.s32.totalorder %s19, 0
      %p113 = por %p111, %p112
      %p114 = scmp.ne.s32.totalorder %s102, %s103
      %p115 = scmp.eq.s32.totalorder %s20, 1
      %p116 = por %p114, %p115
      %p118 = scmp.ne.s32.totalorder %s103, %s117
      %p119 = scmp.eq.s32.totalorder %s20, 0
      %p120 = por %p118, %p119
      %s122 = sadd.s32 %s121, 1
      %p125 = scmp.eq.s32.totalorder %s14, 1
      %p126 = scmp.ne.s32.totalorder %s121, %s123
      %p127 = scmp.eq.s32.totalorder %s14, 0
      %p128 = por %p126, %p127
      %p129 = scmp.ne.s32.totalorder %s121, %s123
      %p130 = scmp.eq.s32.totalorder %s19, 1
      %p131 = por %p129, %p130
      %p132 = scmp.ne.s32.totalorder %s123, %s124
      %p133 = scmp.eq.s32.totalorder %s19, 0
      %p134 = por %p132, %p133
      %p135 = scmp.ne.s32.totalorder %s123, %s124
      %p136 = scmp.eq.s32.totalorder %s20, 1
      %p137 = por %p135, %p136
      %p139 = scmp.ne.s32.totalorder %s124, %s138
      %p140 = scmp.eq.s32.totalorder %s20, 0
      %p141 = por %p139, %p140
      %s142 = ssub.s32 %s14, %s21
      %p143 = scmp.eq.s32.totalorder %s142, 0
      %s145 = sadd.s32 %s144, 1
      %s146 = scalar_select %p143, %s144, %s145
      %p149 = pneg %p143
      %p150 = scmp.eq.s32.totalorder %s14, 1
      %p151 = por %p149, %p150
      %p152 = scmp.ne.s32.totalorder %s144, %s147
      %p153 = scmp.eq.s32.totalorder %s14, 0
      %p154 = por %p152, %p153
      %p155 = scmp.ne.s32.totalorder %s144, %s147
      %p156 = scmp.eq.s32.totalorder %s19, 1
      %p157 = por %p155, %p156
      %p158 = scmp.ne.s32.totalorder %s147, %s148
      %p159 = scmp.eq.s32.totalorder %s19, 0
      %p160 = por %p158, %p159
      %p161 = scmp.ne.s32.totalorder %s147, %s148
      %p162 = scmp.eq.s32.totalorder %s20, 1
      %p163 = por %p161, %p162
      %p165 = scmp.ne.s32.totalorder %s148, %s164
      %p166 = scmp.eq.s32.totalorder %s20, 0
      %p167 = por %p165, %p166
      %p168 = scmp.le.s32.totalorder 1, %s14
      %p169 = scmp.lt.s32.totalorder %s14, 3
      %p170 = pnand %p168, %p169
      %p171 = pneg %p170
      // Predicated region
      $region9: #{multi_head_attention.3} parent=5 // pred_check
        _
      $region10: #{multi_head_attention.3} parent=5 // pred_check_branch
        %173 = sbr.rel (%p170) target = $region12
      $region11: #{multi_head_attention.3} parent=5 // pred_region
        %s174 = ssub.s32 %s14, 1
        // Predicated region
        $region13: #{multi_head_attention.3} parent=11 // pred_check
          %p175 = pneg %p113
        $region14: #{multi_head_attention.3} parent=11 // pred_check_branch
          %177 = sbr.rel (%p175) target = $region16
        $region15: #{multi_head_attention.3} parent=11 // pred_region
          _
        $region16: #{multi_head_attention.3} parent=11 // pred_fallthru
          _
        // Predicated region
        $region17: #{multi_head_attention.3} parent=11 // pred_check
          %p178 = pneg %p134
        $region18: #{multi_head_attention.3} parent=11 // pred_check_branch
          %180 = sbr.rel (%p178) target = $region20
        $region19: #{multi_head_attention.3} parent=11 // pred_region
          _
        $region20: #{multi_head_attention.3} parent=11 // pred_fallthru
          _
      $region12: #{multi_head_attention.3} parent=5 // pred_fallthru
        _
      %p181 = scmp.lt.s32.totalorder %s14, 2
      // Predicated region
      $region21: #{multi_head_attention.3} parent=5 // pred_check
        %p182 = pneg %p181
      $region22: #{multi_head_attention.3} parent=5 // pred_check_branch
        %184 = sbr.rel (%p182) target = $region24
      $region23: #{multi_head_attention.3} parent=5 // pred_region
        // Predicated region
        $region25: #{multi_head_attention.3} parent=23 // pred_check
          %p185 = pneg %p34
        $region26: #{multi_head_attention.3} parent=23 // pred_check_branch
          %187 = sbr.rel (%p185) target = $region28
        $region27: #{multi_head_attention.3} parent=23 // pred_region
          %p188 = scmp.lt.s32.totalorder %s14, 1
          %s189 = scalar_select %p188, %s14, 1
          %s190 = smul.addr %s189, 4
          %s191 = smul.addr %s190, 4
          %s192 = scalar_lea.vmem %s0, %s191
        $region28: #{multi_head_attention.3} parent=23 // pred_fallthru
          _
        // Predicated region
        $region29: #{multi_head_attention.3} parent=23 // pred_check
          %p193 = pneg %p60
        $region30: #{multi_head_attention.3} parent=23 // pred_check_branch
          %195 = sbr.rel (%p193) target = $region32
        $region31: #{multi_head_attention.3} parent=23 // pred_region
          %p196 = scmp.lt.s32.totalorder %s14, 1
          %s197 = scalar_select %p196, %s14, 1
          %s198 = smul.addr %s197, 4
          %s199 = smul.addr %s198, 4
          %s200 = scalar_lea.vmem %s1, %s199
        $region32: #{multi_head_attention.3} parent=23 // pred_fallthru
          _
        // Predicated region
        $region33: #{multi_head_attention.3} parent=23 // pred_check
          %p201 = pneg %p86
        $region34: #{multi_head_attention.3} parent=23 // pred_check_branch
          %203 = sbr.rel (%p201) target = $region36
        $region35: #{multi_head_attention.3} parent=23 // pred_region
          %p204 = scmp.lt.s32.totalorder %s14, 1
          %s205 = scalar_select %p204, %s14, 1
          %s206 = smul.addr %s205, 4
          %s207 = smul.addr %s206, 4
          %s208 = scalar_lea.vmem %s2, %s207
        $region36: #{multi_head_attention.3} parent=23 // pred_fallthru
          _
      $region24: #{multi_head_attention.3} parent=5 // pred_fallthru
        _
      %p209 = scmp.le.s32.totalorder 1, %s14
      %p210 = scmp.lt.s32.totalorder %s14, 3
      %p211 = pnand %p209, %p210
      %p212 = pneg %p211
      // Predicated region
      $region37: #{multi_head_attention.3} parent=5 // pred_check
        _
      $region38: #{multi_head_attention.3} parent=5 // pred_check_branch
        %214 = sbr.rel (%p211) target = $region40
      $region39: #{multi_head_attention.3} parent=5 // pred_region
        %s215 = ssub.s32 %s14, 1
        %p216 = scmp.lt.s32.totalorder %s19, 1
        %s217 = scalar_select %p216, %s19, 1
        %s218 = smul.addr %s217, 4
        %s219 = smul.addr %s218, 4
        %s220 = scalar_lea.vmem %s0, %s219
        %p221 = pneg %p40
        %p222 = pneg %p37
        %p223 = scmp.lt.s32.totalorder %s19, 1
        %s224 = scalar_select %p223, %s19, 1
        %s225 = smul.addr %s224, 4
        %s226 = smul.addr %s225, 4
        %s227 = scalar_lea.vmem %s1, %s226
        %p228 = pneg %p66
        %p229 = pneg %p63
        %p230 = scmp.lt.s32.totalorder %s19, 1
        %s231 = scalar_select %p230, %s19, 1
        %s232 = smul.addr %s231, 4
        %s233 = smul.addr %s232, 4
        %s234 = scalar_lea.vmem %s2, %s233
        %p235 = pneg %p92
        %p236 = pneg %p89
        %p237 = pneg %p113
        %p238 = pneg %p110
        %p239 = pneg %p134
        %p240 = pneg %p131
        %p241 = pneg %p160
        %p242 = pneg %p157
        %s243 = sand.u32 %s147, 1
        %s244 = scalar_lea.sflag [#allocation3], %s243
        %s245 = sand.u32 %s147, 1
        %s246 = smul.addr %s245, 32
        %s247 = scalar_lea.vmem [#allocation2], %s246
        %p248 = scmp.lt.s32.totalorder %s19, 1
        %s249 = scalar_select %p248, %s19, 1
        %s250 = smul.addr %s249, 4
        %s251 = smul.addr %s250, 4
        %s252 = scalar_lea.vmem %s0, %s251
        %p253 = scmp.lt.s32.totalorder %s19, 1
        %s254 = scalar_select %p253, %s19, 1
        %s255 = smul.addr %s254, 4
        %s256 = smul.addr %s255, 4
        %s257 = scalar_lea.vmem %s1, %s256
        %p258 = scmp.lt.s32.totalorder %s19, 1
        %s259 = scalar_select %p258, %s19, 1
        %s260 = smul.addr %s259, 4
        %s261 = smul.addr %s260, 4
        %s262 = scalar_lea.vmem %s2, %s261
        %v265 = vld [vmem:[%s252] sm:$0xf]
        %v266 = vld [vmem:[%s252 + $0x4] sm:$0xf]
        %v267 = vld [vmem:[%s252 + $0x8] sm:$0xf]
        %v268 = vld [vmem:[%s252 + $0xc] sm:$0xf]
        %v269 = vld [vmem:[%s257] sm:$0xf]
        %v270 = vld [vmem:[%s257 + $0x4] sm:$0xf]
        %v271 = vld [vmem:[%s257 + $0x8] sm:$0xf]
        %v272 = vld [vmem:[%s257 + $0xc] sm:$0xf]
        %v273 = vld [vmem:[%s262] sm:$0xf]
        %v274 = vld [vmem:[%s262 + $0x4] sm:$0xf]
        %v275 = vld [vmem:[%s262 + $0x8] sm:$0xf]
        %v276 = vld [vmem:[%s262 + $0xc] sm:$0xf]
        %v277 = vmul.bf16 %v265, 1040203264
        %v278 = vmul.bf16 %v266, 1040203264
        %v279 = vmul.bf16 %v267, 1040203264
        %v280 = vmul.bf16 %v268, 1040203264
        %v285 = vunpack.c.l.b16 %v277
        %v286 = vunpack.c.l.b16 %v278
        %v287 = vunpack.c.l.b16 %v279
        %v288 = vunpack.c.l.b16 %v280
        %v289 = vpack.c.b16 %v286, %v285
        %v290 = vpack.c.b16 %v288, %v287
        %v295 = vunpack.c.l.b16 %v269
        %v296 = vunpack.c.l.b16 %v270
        %v297 = vunpack.c.l.b16 %v271
        %v298 = vunpack.c.l.b16 %v272
        %v299 = vpack.c.b16 %v296, %v295
        %v300 = vpack.c.b16 %v298, %v297
        %vm301 = vcmask 130048
        %v303 = vsel %vm301, %v289, 0
        %v306 = vsel %vm301, %v290, 0
        %v309 = vsel %vm301, %v299, 0
        %v312 = vsel %vm301, %v300, 0
        %314 = vmatprep.subr.bf16.mxu0 0
        %315 = vmatpush1.bf16.xpose.msra.mxu0 0
        %316 = vmatprep.subr.bf16.mxu0 0
        %317 = vmatpush1.bf16.xpose.msra.mxu0 0
        %318 = vmatprep.subr.bf16.mxu0 0
        %319 = vmatpush1.bf16.xpose.msra.mxu0 0
        %320 = vmatprep.subr.bf16.mxu0 0
        %321 = vmatpush1.bf16.xpose.msra.mxu0 0
        %322 = vmatprep.subr.bf16.mxu0 0
        %323 = vmatpush1.bf16.xpose.msra.mxu0 0
        %324 = vmatprep.subr.bf16.mxu0 0
        %325 = vmatpush1.bf16.xpose.msra.mxu0 0
        %326 = vmatprep.subr.bf16.mxu0 0
        %327 = vmatpush1.bf16.xpose.msra.mxu0 %v312
        %328 = vmatprep.subr.bf16.mxu0 0
        %329 = vmatpush1.bf16.xpose.msra.mxu0 %v309
        %330 = vmatprep.subr.bf16.mxu0 0
        %331 = vmatpush2.bf16.xpose.msra.mxu0 0
        %332 = vmatprep.subr.bf16.mxu0 0
        %333 = vmatpush2.bf16.xpose.msra.mxu0 0
        %334 = vmatprep.subr.bf16.mxu0 0
        %335 = vmatpush2.bf16.xpose.msra.mxu0 0
        %336 = vmatprep.subr.bf16.mxu0 0
        %337 = vmatpush2.bf16.xpose.msra.mxu0 0
        %338 = vmatprep.subr.bf16.mxu0 0
        %339 = vmatpush2.bf16.xpose.msra.mxu0 0
        %340 = vmatprep.subr.bf16.mxu0 0
        %341 = vmatpush2.bf16.xpose.msra.mxu0 0
        %342 = vmatprep.subr.bf16.mxu0 0
        %343 = vmatpush2.bf16.xpose.msra.mxu0 0
        %344 = vmatprep.subr.bf16.mxu0 0
        %345 = vmatpush2.bf16.xpose.msra.mxu0 0
        %346 = vmatprep.mubr.bf16.mxu0 0
        %347 = vmatmul.mubr.bf16.gmra.mxu0 %v303
        %v348 = vpop.f32.mrf.mxu0
        %v349 = vadd.f32 0.0, %v348
        %v350 = vpop.f32.mrf.mxu0
        %v351 = vpop.f32.mrf.mxu0
        %v352 = vadd.f32 0.0, %v351
        %v353 = vpop.f32.mrf.mxu0
        %354 = vmatprep.mubr.bf16.mxu0 0
        %355 = vmatmul.mubr.bf16.gmra.mxu0 %v306
        %v356 = vpop.f32.mrf.mxu0
        %v357 = vadd.f32 0.0, %v356
        %v358 = vpop.f32.mrf.mxu0
        %v359 = vpop.f32.mrf.mxu0
        %v360 = vadd.f32 0.0, %v359
        %v361 = vpop.f32.mrf.mxu0
        %362 = vdwg.mxu0
        %vm363 = vcmask 261120
        %v364 = vsel %vm363, %v349, -inf
        %v365 = vsel %vm363, %v352, -inf
        %v366 = vsel %vm363, %v357, -inf
        %v367 = vsel %vm363, %v360, -inf
        %v368 = vmax.f32 %v364, %v365
        %v369 = vmax.f32 %v366, %v367
        %v370 = vmax.f32 %v368, %v369
        %v371 = vrot.slane %v370, 4
        %v372 = vmax.f32 %v370, %v371
        %v373 = vrot.slane %v372, 2
        %v374 = vmax.f32 %v372, %v373
        %v375 = vrot.slane %v374, 1
        %v376 = vmax.f32 %v374, %v375
        %v377 = vsub.f32 %v349, %v376
        %v378 = vsub.f32 %v352, %v376
        %v379 = vsub.f32 %v357, %v376
        %v380 = vsub.f32 %v360, %v376
        %v381 = vmul.f32 %v377, 1.442695
        %v382 = vpow.pop %v381
        %v383 = vmul.f32 %v378, 1.442695
        %v384 = vpow.pop %v383
        %v385 = vmul.f32 %v379, 1.442695
        %v386 = vpow.pop %v385
        %v387 = vmul.f32 %v380, 1.442695
        %v388 = vpow.pop %v387
        %v389 = vsel %vm363, %v382, 0.0
        %v390 = vsel %vm363, %v384, 0.0
        %v391 = vadd.f32 %v389, %v390
        %v392 = vsel %vm363, %v386, 0.0
        %v393 = vadd.f32 %v391, %v392
        %v394 = vsel %vm363, %v388, 0.0
        %v395 = vadd.f32 %v393, %v394
        %v396 = vrot.slane %v395, 4
        %v397 = vadd.f32 %v395, %v396
        %v398 = vrot.slane %v397, 2
        %v399 = vadd.f32 %v397, %v398
        %v400 = vrot.slane %v399, 1
        %v401 = vadd.f32 %v399, %v400
        %v402 = vrcp.pop %v401
        %v403 = vmul.f32 %v382, %v402
        %v404 = vmul.f32 %v384, %v402
        %v405 = vmul.f32 %v386, %v402
        %v406 = vmul.f32 %v388, %v402
        %v407 = vpack.c.bf16 %v404, %v403
        %v408 = vpack.c.bf16 %v406, %v405
        %v413 = vunpack.c.l.b16 %v273
        %v414 = vunpack.c.l.b16 %v274
        %v415 = vunpack.c.l.b16 %v275
        %v416 = vunpack.c.l.b16 %v276
        %v417 = vpack.c.b16 %v414, %v413
        %v418 = vpack.c.b16 %v416, %v415
        %v422 = vsel %vm363, %v407, 0
        %v425 = vsel %vm363, %v408, 0
        %427 = vmatprep.subr.bf16.mxu0 0
        %428 = vmatpush1.bf16.msra.mxu0 0
        %429 = vmatprep.subr.bf16.mxu0 0
        %430 = vmatpush1.bf16.msra.mxu0 0
        %431 = vmatprep.subr.bf16.mxu0 0
        %432 = vmatpush1.bf16.msra.mxu0 0
        %433 = vmatprep.subr.bf16.mxu0 0
        %434 = vmatpush1.bf16.msra.mxu0 0
        %435 = vmatprep.subr.bf16.mxu0 0
        %436 = vmatpush1.bf16.msra.mxu0 0
        %437 = vmatprep.subr.bf16.mxu0 0
        %438 = vmatpush1.bf16.msra.mxu0 0
        %439 = vmatprep.subr.bf16.mxu0 0
        %440 = vmatpush1.bf16.msra.mxu0 %v418
        %441 = vmatprep.subr.bf16.mxu0 0
        %442 = vmatpush1.bf16.msra.mxu0 %v417
        %443 = vmatprep.subr.bf16.mxu0 0
        %444 = vmatpush2.bf16.msra.mxu0 0
        %445 = vmatprep.subr.bf16.mxu0 0
        %446 = vmatpush2.bf16.msra.mxu0 0
        %447 = vmatprep.subr.bf16.mxu0 0
        %448 = vmatpush2.bf16.msra.mxu0 0
        %449 = vmatprep.subr.bf16.mxu0 0
        %450 = vmatpush2.bf16.msra.mxu0 0
        %451 = vmatprep.subr.bf16.mxu0 0
        %452 = vmatpush2.bf16.msra.mxu0 0
        %453 = vmatprep.subr.bf16.mxu0 0
        %454 = vmatpush2.bf16.msra.mxu0 0
        %455 = vmatprep.subr.bf16.mxu0 0
        %456 = vmatpush2.bf16.msra.mxu0 0
        %457 = vmatprep.subr.bf16.mxu0 0
        %458 = vmatpush2.bf16.msra.mxu0 0
        %459 = vmatprep.mubr.bf16.mxu0 0
        %460 = vmatmul.mubr.bf16.gmra.mxu0 %v422
        %v461 = vpop.f32.mrf.mxu0
        %v462 = vadd.f32 0.0, %v461
        %v463 = vpop.f32.mrf.mxu0
        %v464 = vpop.f32.mrf.mxu0
        %v465 = vadd.f32 0.0, %v464
        %v466 = vpop.f32.mrf.mxu0
        %467 = vmatprep.mubr.bf16.mxu0 0
        %468 = vmatmul.mubr.bf16.gmra.mxu0 %v425
        %v469 = vpop.f32.mrf.mxu0
        %v470 = vadd.f32 0.0, %v469
        %v471 = vpop.f32.mrf.mxu0
        %v472 = vpop.f32.mrf.mxu0
        %v473 = vadd.f32 0.0, %v472
        %v474 = vpop.f32.mrf.mxu0
        %475 = vdwg.mxu0
        %476 = vrot.lane.b32.xlu0 %v289, 112
        %v477 = vpop.permute.xlu0 %476
        %478 = vrot.lane.b32.xlu0 %v290, 112
        %v479 = vpop.permute.xlu0 %478
        %480 = vrot.lane.b32.xlu0 %v299, 112
        %v481 = vpop.permute.xlu0 %480
        %482 = vrot.lane.b32.xlu0 %v300, 112
        %v483 = vpop.permute.xlu0 %482
        %v485 = vsel %vm301, %v477, 0
        %v488 = vsel %vm301, %v479, 0
        %v491 = vsel %vm301, %v481, 0
        %v494 = vsel %vm301, %v483, 0
        %496 = vmatprep.subr.bf16.mxu0 0
        %497 = vmatpush1.bf16.xpose.msra.mxu0 0
        %498 = vmatprep.subr.bf16.mxu0 0
        %499 = vmatpush1.bf16.xpose.msra.mxu0 0
        %500 = vmatprep.subr.bf16.mxu0 0
        %501 = vmatpush1.bf16.xpose.msra.mxu0 0
        %502 = vmatprep.subr.bf16.mxu0 0
        %503 = vmatpush1.bf16.xpose.msra.mxu0 0
        %504 = vmatprep.subr.bf16.mxu0 0
        %505 = vmatpush1.bf16.xpose.msra.mxu0 0
        %506 = vmatprep.subr.bf16.mxu0 0
        %507 = vmatpush1.bf16.xpose.msra.mxu0 0
        %508 = vmatprep.subr.bf16.mxu0 0
        %509 = vmatpush1.bf16.xpose.msra.mxu0 %v494
        %510 = vmatprep.subr.bf16.mxu0 0
        %511 = vmatpush1.bf16.xpose.msra.mxu0 %v491
        %512 = vmatprep.subr.bf16.mxu0 0
        %513 = vmatpush2.bf16.xpose.msra.mxu0 0
        %514 = vmatprep.subr.bf16.mxu0 0
        %515 = vmatpush2.bf16.xpose.msra.mxu0 0
        %516 = vmatprep.subr.bf16.mxu0 0
        %517 = vmatpush2.bf16.xpose.msra.mxu0 0
        %518 = vmatprep.subr.bf16.mxu0 0
        %519 = vmatpush2.bf16.xpose.msra.mxu0 0
        %520 = vmatprep.subr.bf16.mxu0 0
        %521 = vmatpush2.bf16.xpose.msra.mxu0 0
        %522 = vmatprep.subr.bf16.mxu0 0
        %523 = vmatpush2.bf16.xpose.msra.mxu0 0
        %524 = vmatprep.subr.bf16.mxu0 0
        %525 = vmatpush2.bf16.xpose.msra.mxu0 0
        %526 = vmatprep.subr.bf16.mxu0 0
        %527 = vmatpush2.bf16.xpose.msra.mxu0 0
        %528 = vmatprep.mubr.bf16.mxu0 0
        %529 = vmatmul.mubr.bf16.gmra.mxu0 %v485
        %v530 = vpop.f32.mrf.mxu0
        %v531 = vadd.f32 0.0, %v530
        %v532 = vpop.f32.mrf.mxu0
        %v533 = vpop.f32.mrf.mxu0
        %v534 = vadd.f32 0.0, %v533
        %v535 = vpop.f32.mrf.mxu0
        %536 = vmatprep.mubr.bf16.mxu0 0
        %537 = vmatmul.mubr.bf16.gmra.mxu0 %v488
        %v538 = vpop.f32.mrf.mxu0
        %v539 = vadd.f32 0.0, %v538
        %v540 = vpop.f32.mrf.mxu0
        %v541 = vpop.f32.mrf.mxu0
        %v542 = vadd.f32 0.0, %v541
        %v543 = vpop.f32.mrf.mxu0
        %544 = vdwg.mxu0
        %v545 = vsel %vm363, %v531, -inf
        %v546 = vsel %vm363, %v534, -inf
        %v547 = vsel %vm363, %v539, -inf
        %v548 = vsel %vm363, %v542, -inf
        %v549 = vmax.f32 %v545, %v546
        %v550 = vmax.f32 %v547, %v548
        %v551 = vmax.f32 %v549, %v550
        %v552 = vrot.slane %v551, 4
        %v553 = vmax.f32 %v551, %v552
        %v554 = vrot.slane %v553, 2
        %v555 = vmax.f32 %v553, %v554
        %v556 = vrot.slane %v555, 1
        %v557 = vmax.f32 %v555, %v556
        %v558 = vsub.f32 %v531, %v557
        %v559 = vsub.f32 %v534, %v557
        %v560 = vsub.f32 %v539, %v557
        %v561 = vsub.f32 %v542, %v557
        %v562 = vmul.f32 %v558, 1.442695
        %v563 = vpow.pop %v562
        %v564 = vmul.f32 %v559, 1.442695
        %v565 = vpow.pop %v564
        %v566 = vmul.f32 %v560, 1.442695
        %v567 = vpow.pop %v566
        %v568 = vmul.f32 %v561, 1.442695
        %v569 = vpow.pop %v568
        %v570 = vsel %vm363, %v563, 0.0
        %v571 = vsel %vm363, %v565, 0.0
        %v572 = vadd.f32 %v570, %v571
        %v573 = vsel %vm363, %v567, 0.0
        %v574 = vadd.f32 %v572, %v573
        %v575 = vsel %vm363, %v569, 0.0
        %v576 = vadd.f32 %v574, %v575
        %v577 = vrot.slane %v576, 4
        %v578 = vadd.f32 %v576, %v577
        %v579 = vrot.slane %v578, 2
        %v580 = vadd.f32 %v578, %v579
        %v581 = vrot.slane %v580, 1
        %v582 = vadd.f32 %v580, %v581
        %v583 = vrcp.pop %v582
        %v584 = vmul.f32 %v563, %v583
        %v585 = vmul.f32 %v565, %v583
        %v586 = vmul.f32 %v567, %v583
        %v587 = vmul.f32 %v569, %v583
        %v588 = vpack.c.bf16 %v585, %v584
        %v589 = vpack.c.bf16 %v587, %v586
        %590 = vrot.lane.b32.xlu0 %v417, 112
        %v591 = vpop.permute.xlu0 %590
        %592 = vrot.lane.b32.xlu0 %v418, 112
        %v593 = vpop.permute.xlu0 %592
        %v597 = vsel %vm363, %v588, 0
        %v600 = vsel %vm363, %v589, 0
        %602 = vmatprep.subr.bf16.mxu0 0
        %603 = vmatpush1.bf16.msra.mxu0 0
        %604 = vmatprep.subr.bf16.mxu0 0
        %605 = vmatpush1.bf16.msra.mxu0 0
        %606 = vmatprep.subr.bf16.mxu0 0
        %607 = vmatpush1.bf16.msra.mxu0 0
        %608 = vmatprep.subr.bf16.mxu0 0
        %609 = vmatpush1.bf16.msra.mxu0 0
        %610 = vmatprep.subr.bf16.mxu0 0
        %611 = vmatpush1.bf16.msra.mxu0 0
        %612 = vmatprep.subr.bf16.mxu0 0
        %613 = vmatpush1.bf16.msra.mxu0 0
        %614 = vmatprep.subr.bf16.mxu0 0
        %615 = vmatpush1.bf16.msra.mxu0 %v593
        %616 = vmatprep.subr.bf16.mxu0 0
        %617 = vmatpush1.bf16.msra.mxu0 %v591
        %618 = vmatprep.subr.bf16.mxu0 0
        %619 = vmatpush2.bf16.msra.mxu0 0
        %620 = vmatprep.subr.bf16.mxu0 0
        %621 = vmatpush2.bf16.msra.mxu0 0
        %622 = vmatprep.subr.bf16.mxu0 0
        %623 = vmatpush2.bf16.msra.mxu0 0
        %624 = vmatprep.subr.bf16.mxu0 0
        %625 = vmatpush2.bf16.msra.mxu0 0
        %626 = vmatprep.subr.bf16.mxu0 0
        %627 = vmatpush2.bf16.msra.mxu0 0
        %628 = vmatprep.subr.bf16.mxu0 0
        %629 = vmatpush2.bf16.msra.mxu0 0
        %630 = vmatprep.subr.bf16.mxu0 0
        %631 = vmatpush2.bf16.msra.mxu0 0
        %632 = vmatprep.subr.bf16.mxu0 0
        %633 = vmatpush2.bf16.msra.mxu0 0
        %634 = vmatprep.mubr.bf16.mxu0 0
        %635 = vmatmul.mubr.bf16.gmra.mxu0 %v597
        %v636 = vpop.f32.mrf.mxu0
        %v637 = vadd.f32 0.0, %v636
        %v638 = vpop.f32.mrf.mxu0
        %v639 = vpop.f32.mrf.mxu0
        %v640 = vadd.f32 0.0, %v639
        %v641 = vpop.f32.mrf.mxu0
        %642 = vmatprep.mubr.bf16.mxu0 0
        %643 = vmatmul.mubr.bf16.gmra.mxu0 %v600
        %v644 = vpop.f32.mrf.mxu0
        %v645 = vadd.f32 0.0, %v644
        %v646 = vpop.f32.mrf.mxu0
        %v647 = vpop.f32.mrf.mxu0
        %v648 = vadd.f32 0.0, %v647
        %v649 = vpop.f32.mrf.mxu0
        %650 = vdwg.mxu0
        %651 = vrot.lane.b32.xlu0 %v289, 96
        %v652 = vpop.permute.xlu0 %651
        %653 = vrot.lane.b32.xlu0 %v290, 96
        %v654 = vpop.permute.xlu0 %653
        %655 = vrot.lane.b32.xlu0 %v299, 96
        %v656 = vpop.permute.xlu0 %655
        %657 = vrot.lane.b32.xlu0 %v300, 96
        %v658 = vpop.permute.xlu0 %657
        %v660 = vsel %vm301, %v652, 0
        %v663 = vsel %vm301, %v654, 0
        %v666 = vsel %vm301, %v656, 0
        %v669 = vsel %vm301, %v658, 0
        %671 = vmatprep.subr.bf16.mxu0 0
        %672 = vmatpush1.bf16.xpose.msra.mxu0 0
        %673 = vmatprep.subr.bf16.mxu0 0
        %674 = vmatpush1.bf16.xpose.msra.mxu0 0
        %675 = vmatprep.subr.bf16.mxu0 0
        %676 = vmatpush1.bf16.xpose.msra.mxu0 0
        %677 = vmatprep.subr.bf16.mxu0 0
        %678 = vmatpush1.bf16.xpose.msra.mxu0 0
        %679 = vmatprep.subr.bf16.mxu0 0
        %680 = vmatpush1.bf16.xpose.msra.mxu0 0
        %681 = vmatprep.subr.bf16.mxu0 0
        %682 = vmatpush1.bf16.xpose.msra.mxu0 0
        %683 = vmatprep.subr.bf16.mxu0 0
        %684 = vmatpush1.bf16.xpose.msra.mxu0 %v669
        %685 = vmatprep.subr.bf16.mxu0 0
        %686 = vmatpush1.bf16.xpose.msra.mxu0 %v666
        %687 = vmatprep.subr.bf16.mxu0 0
        %688 = vmatpush2.bf16.xpose.msra.mxu0 0
        %689 = vmatprep.subr.bf16.mxu0 0
        %690 = vmatpush2.bf16.xpose.msra.mxu0 0
        %691 = vmatprep.subr.bf16.mxu0 0
        %692 = vmatpush2.bf16.xpose.msra.mxu0 0
        %693 = vmatprep.subr.bf16.mxu0 0
        %694 = vmatpush2.bf16.xpose.msra.mxu0 0
        %695 = vmatprep.subr.bf16.mxu0 0
        %696 = vmatpush2.bf16.xpose.msra.mxu0 0
        %697 = vmatprep.subr.bf16.mxu0 0
        %698 = vmatpush2.bf16.xpose.msra.mxu0 0
        %699 = vmatprep.subr.bf16.mxu0 0
        %700 = vmatpush2.bf16.xpose.msra.mxu0 0
        %701 = vmatprep.subr.bf16.mxu0 0
        %702 = vmatpush2.bf16.xpose.msra.mxu0 0
        %703 = vmatprep.mubr.bf16.mxu0 0
        %704 = vmatmul.mubr.bf16.gmra.mxu0 %v660
        %v705 = vpop.f32.mrf.mxu0
        %v706 = vadd.f32 0.0, %v705
        %v707 = vpop.f32.mrf.mxu0
        %v708 = vpop.f32.mrf.mxu0
        %v709 = vadd.f32 0.0, %v708
        %v710 = vpop.f32.mrf.mxu0
        %711 = vmatprep.mubr.bf16.mxu0 0
        %712 = vmatmul.mubr.bf16.gmra.mxu0 %v663
        %v713 = vpop.f32.mrf.mxu0
        %v714 = vadd.f32 0.0, %v713
        %v715 = vpop.f32.mrf.mxu0
        %v716 = vpop.f32.mrf.mxu0
        %v717 = vadd.f32 0.0, %v716
        %v718 = vpop.f32.mrf.mxu0
        %719 = vdwg.mxu0
        %v720 = vsel %vm363, %v706, -inf
        %v721 = vsel %vm363, %v709, -inf
        %v722 = vsel %vm363, %v714, -inf
        %v723 = vsel %vm363, %v717, -inf
        %v724 = vmax.f32 %v720, %v721
        %v725 = vmax.f32 %v722, %v723
        %v726 = vmax.f32 %v724, %v725
        %v727 = vrot.slane %v726, 4
        %v728 = vmax.f32 %v726, %v727
        %v729 = vrot.slane %v728, 2
        %v730 = vmax.f32 %v728, %v729
        %v731 = vrot.slane %v730, 1
        %v732 = vmax.f32 %v730, %v731
        %v733 = vsub.f32 %v706, %v732
        %v734 = vsub.f32 %v709, %v732
        %v735 = vsub.f32 %v714, %v732
        %v736 = vsub.f32 %v717, %v732
        %v737 = vmul.f32 %v733, 1.442695
        %v738 = vpow.pop %v737
        %v739 = vmul.f32 %v734, 1.442695
        %v740 = vpow.pop %v739
        %v741 = vmul.f32 %v735, 1.442695
        %v742 = vpow.pop %v741
        %v743 = vmul.f32 %v736, 1.442695
        %v744 = vpow.pop %v743
        %v745 = vsel %vm363, %v738, 0.0
        %v746 = vsel %vm363, %v740, 0.0
        %v747 = vadd.f32 %v745, %v746
        %v748 = vsel %vm363, %v742, 0.0
        %v749 = vadd.f32 %v747, %v748
        %v750 = vsel %vm363, %v744, 0.0
        %v751 = vadd.f32 %v749, %v750
        %v752 = vrot.slane %v751, 4
        %v753 = vadd.f32 %v751, %v752
        %v754 = vrot.slane %v753, 2
        %v755 = vadd.f32 %v753, %v754
        %v756 = vrot.slane %v755, 1
        %v757 = vadd.f32 %v755, %v756
        %v758 = vrcp.pop %v757
        %v759 = vmul.f32 %v738, %v758
        %v760 = vmul.f32 %v740, %v758
        %v761 = vmul.f32 %v742, %v758
        %v762 = vmul.f32 %v744, %v758
        %v763 = vpack.c.bf16 %v760, %v759
        %v764 = vpack.c.bf16 %v762, %v761
        %765 = vrot.lane.b32.xlu0 %v417, 96
        %v766 = vpop.permute.xlu0 %765
        %767 = vrot.lane.b32.xlu0 %v418, 96
        %v768 = vpop.permute.xlu0 %767
        %v772 = vsel %vm363, %v763, 0
        %v775 = vsel %vm363, %v764, 0
        %777 = vmatprep.subr.bf16.mxu0 0
        %778 = vmatpush1.bf16.msra.mxu0 0
        %779 = vmatprep.subr.bf16.mxu0 0
        %780 = vmatpush1.bf16.msra.mxu0 0
        %781 = vmatprep.subr.bf16.mxu0 0
        %782 = vmatpush1.bf16.msra.mxu0 0
        %783 = vmatprep.subr.bf16.mxu0 0
        %784 = vmatpush1.bf16.msra.mxu0 0
        %785 = vmatprep.subr.bf16.mxu0 0
        %786 = vmatpush1.bf16.msra.mxu0 0
        %787 = vmatprep.subr.bf16.mxu0 0
        %788 = vmatpush1.bf16.msra.mxu0 0
        %789 = vmatprep.subr.bf16.mxu0 0
        %790 = vmatpush1.bf16.msra.mxu0 %v768
        %791 = vmatprep.subr.bf16.mxu0 0
        %792 = vmatpush1.bf16.msra.mxu0 %v766
        %793 = vmatprep.subr.bf16.mxu0 0
        %794 = vmatpush2.bf16.msra.mxu0 0
        %795 = vmatprep.subr.bf16.mxu0 0
        %796 = vmatpush2.bf16.msra.mxu0 0
        %797 = vmatprep.subr.bf16.mxu0 0
        %798 = vmatpush2.bf16.msra.mxu0 0
        %799 = vmatprep.subr.bf16.mxu0 0
        %800 = vmatpush2.bf16.msra.mxu0 0
        %801 = vmatprep.subr.bf16.mxu0 0
        %802 = vmatpush2.bf16.msra.mxu0 0
        %803 = vmatprep.subr.bf16.mxu0 0
        %804 = vmatpush2.bf16.msra.mxu0 0
        %805 = vmatprep.subr.bf16.mxu0 0
        %806 = vmatpush2.bf16.msra.mxu0 0
        %807 = vmatprep.subr.bf16.mxu0 0
        %808 = vmatpush2.bf16.msra.mxu0 0
        %809 = vmatprep.mubr.bf16.mxu0 0
        %810 = vmatmul.mubr.bf16.gmra.mxu0 %v772
        %v811 = vpop.f32.mrf.mxu0
        %v812 = vadd.f32 0.0, %v811
        %v813 = vpop.f32.mrf.mxu0
        %v814 = vpop.f32.mrf.mxu0
        %v815 = vadd.f32 0.0, %v814
        %v816 = vpop.f32.mrf.mxu0
        %817 = vmatprep.mubr.bf16.mxu0 0
        %818 = vmatmul.mubr.bf16.gmra.mxu0 %v775
        %v819 = vpop.f32.mrf.mxu0
        %v820 = vadd.f32 0.0, %v819
        %v821 = vpop.f32.mrf.mxu0
        %v822 = vpop.f32.mrf.mxu0
        %v823 = vadd.f32 0.0, %v822
        %v824 = vpop.f32.mrf.mxu0
        %825 = vdwg.mxu0
        %826 = vrot.lane.b32.xlu0 %v289, 80
        %v827 = vpop.permute.xlu0 %826
        %828 = vrot.lane.b32.xlu0 %v290, 80
        %v829 = vpop.permute.xlu0 %828
        %830 = vrot.lane.b32.xlu0 %v299, 80
        %v831 = vpop.permute.xlu0 %830
        %832 = vrot.lane.b32.xlu0 %v300, 80
        %v833 = vpop.permute.xlu0 %832
        %v835 = vsel %vm301, %v827, 0
        %v838 = vsel %vm301, %v829, 0
        %v841 = vsel %vm301, %v831, 0
        %v844 = vsel %vm301, %v833, 0
        %846 = vmatprep.subr.bf16.mxu0 0
        %847 = vmatpush1.bf16.xpose.msra.mxu0 0
        %848 = vmatprep.subr.bf16.mxu0 0
        %849 = vmatpush1.bf16.xpose.msra.mxu0 0
        %850 = vmatprep.subr.bf16.mxu0 0
        %851 = vmatpush1.bf16.xpose.msra.mxu0 0
        %852 = vmatprep.subr.bf16.mxu0 0
        %853 = vmatpush1.bf16.xpose.msra.mxu0 0
        %854 = vmatprep.subr.bf16.mxu0 0
        %855 = vmatpush1.bf16.xpose.msra.mxu0 0
        %856 = vmatprep.subr.bf16.mxu0 0
        %857 = vmatpush1.bf16.xpose.msra.mxu0 0
        %858 = vmatprep.subr.bf16.mxu0 0
        %859 = vmatpush1.bf16.xpose.msra.mxu0 %v844
        %860 = vmatprep.subr.bf16.mxu0 0
        %861 = vmatpush1.bf16.xpose.msra.mxu0 %v841
        %862 = vmatprep.subr.bf16.mxu0 0
        %863 = vmatpush2.bf16.xpose.msra.mxu0 0
        %864 = vmatprep.subr.bf16.mxu0 0
        %865 = vmatpush2.bf16.xpose.msra.mxu0 0
        %866 = vmatprep.subr.bf16.mxu0 0
        %867 = vmatpush2.bf16.xpose.msra.mxu0 0
        %868 = vmatprep.subr.bf16.mxu0 0
        %869 = vmatpush2.bf16.xpose.msra.mxu0 0
        %870 = vmatprep.subr.bf16.mxu0 0
        %871 = vmatpush2.bf16.xpose.msra.mxu0 0
        %872 = vmatprep.subr.bf16.mxu0 0
        %873 = vmatpush2.bf16.xpose.msra.mxu0 0
        %874 = vmatprep.subr.bf16.mxu0 0
        %875 = vmatpush2.bf16.xpose.msra.mxu0 0
        %876 = vmatprep.subr.bf16.mxu0 0
        %877 = vmatpush2.bf16.xpose.msra.mxu0 0
        %878 = vmatprep.mubr.bf16.mxu0 0
        %879 = vmatmul.mubr.bf16.gmra.mxu0 %v835
        %v880 = vpop.f32.mrf.mxu0
        %v881 = vadd.f32 0.0, %v880
        %v882 = vpop.f32.mrf.mxu0
        %v883 = vpop.f32.mrf.mxu0
        %v884 = vadd.f32 0.0, %v883
        %v885 = vpop.f32.mrf.mxu0
        %886 = vmatprep.mubr.bf16.mxu0 0
        %887 = vmatmul.mubr.bf16.gmra.mxu0 %v838
        %v888 = vpop.f32.mrf.mxu0
        %v889 = vadd.f32 0.0, %v888
        %v890 = vpop.f32.mrf.mxu0
        %v891 = vpop.f32.mrf.mxu0
        %v892 = vadd.f32 0.0, %v891
        %v893 = vpop.f32.mrf.mxu0
        %894 = vdwg.mxu0
        %v895 = vsel %vm363, %v881, -inf
        %v896 = vsel %vm363, %v884, -inf
        %v897 = vsel %vm363, %v889, -inf
        %v898 = vsel %vm363, %v892, -inf
        %v899 = vmax.f32 %v895, %v896
        %v900 = vmax.f32 %v897, %v898
        %v901 = vmax.f32 %v899, %v900
        %v902 = vrot.slane %v901, 4
        %v903 = vmax.f32 %v901, %v902
        %v904 = vrot.slane %v903, 2
        %v905 = vmax.f32 %v903, %v904
        %v906 = vrot.slane %v905, 1
        %v907 = vmax.f32 %v905, %v906
        %v908 = vsub.f32 %v881, %v907
        %v909 = vsub.f32 %v884, %v907
        %v910 = vsub.f32 %v889, %v907
        %v911 = vsub.f32 %v892, %v907
        %v912 = vmul.f32 %v908, 1.442695
        %v913 = vpow.pop %v912
        %v914 = vmul.f32 %v909, 1.442695
        %v915 = vpow.pop %v914
        %v916 = vmul.f32 %v910, 1.442695
        %v917 = vpow.pop %v916
        %v918 = vmul.f32 %v911, 1.442695
        %v919 = vpow.pop %v918
        %v920 = vsel %vm363, %v913, 0.0
        %v921 = vsel %vm363, %v915, 0.0
        %v922 = vadd.f32 %v920, %v921
        %v923 = vsel %vm363, %v917, 0.0
        %v924 = vadd.f32 %v922, %v923
        %v925 = vsel %vm363, %v919, 0.0
        %v926 = vadd.f32 %v924, %v925
        %v927 = vrot.slane %v926, 4
        %v928 = vadd.f32 %v926, %v927
        %v929 = vrot.slane %v928, 2
        %v930 = vadd.f32 %v928, %v929
        %v931 = vrot.slane %v930, 1
        %v932 = vadd.f32 %v930, %v931
        %v933 = vrcp.pop %v932
        %v934 = vmul.f32 %v913, %v933
        %v935 = vmul.f32 %v915, %v933
        %v936 = vmul.f32 %v917, %v933
        %v937 = vmul.f32 %v919, %v933
        %v938 = vpack.c.bf16 %v935, %v934
        %v939 = vpack.c.bf16 %v937, %v936
        %940 = vrot.lane.b32.xlu0 %v417, 80
        %v941 = vpop.permute.xlu0 %940
        %942 = vrot.lane.b32.xlu0 %v418, 80
        %v943 = vpop.permute.xlu0 %942
        %v947 = vsel %vm363, %v938, 0
        %v950 = vsel %vm363, %v939, 0
        %952 = vmatprep.subr.bf16.mxu0 0
        %953 = vmatpush1.bf16.msra.mxu0 0
        %954 = vmatprep.subr.bf16.mxu0 0
        %955 = vmatpush1.bf16.msra.mxu0 0
        %956 = vmatprep.subr.bf16.mxu0 0
        %957 = vmatpush1.bf16.msra.mxu0 0
        %958 = vmatprep.subr.bf16.mxu0 0
        %959 = vmatpush1.bf16.msra.mxu0 0
        %960 = vmatprep.subr.bf16.mxu0 0
        %961 = vmatpush1.bf16.msra.mxu0 0
        %962 = vmatprep.subr.bf16.mxu0 0
        %963 = vmatpush1.bf16.msra.mxu0 0
        %964 = vmatprep.subr.bf16.mxu0 0
        %965 = vmatpush1.bf16.msra.mxu0 %v943
        %966 = vmatprep.subr.bf16.mxu0 0
        %967 = vmatpush1.bf16.msra.mxu0 %v941
        %968 = vmatprep.subr.bf16.mxu0 0
        %969 = vmatpush2.bf16.msra.mxu0 0
        %970 = vmatprep.subr.bf16.mxu0 0
        %971 = vmatpush2.bf16.msra.mxu0 0
        %972 = vmatprep.subr.bf16.mxu0 0
        %973 = vmatpush2.bf16.msra.mxu0 0
        %974 = vmatprep.subr.bf16.mxu0 0
        %975 = vmatpush2.bf16.msra.mxu0 0
        %976 = vmatprep.subr.bf16.mxu0 0
        %977 = vmatpush2.bf16.msra.mxu0 0
        %978 = vmatprep.subr.bf16.mxu0 0
        %979 = vmatpush2.bf16.msra.mxu0 0
        %980 = vmatprep.subr.bf16.mxu0 0
        %981 = vmatpush2.bf16.msra.mxu0 0
        %982 = vmatprep.subr.bf16.mxu0 0
        %983 = vmatpush2.bf16.msra.mxu0 0
        %984 = vmatprep.mubr.bf16.mxu0 0
        %985 = vmatmul.mubr.bf16.gmra.mxu0 %v947
        %v986 = vpop.f32.mrf.mxu0
        %v987 = vadd.f32 0.0, %v986
        %v988 = vpop.f32.mrf.mxu0
        %v989 = vpop.f32.mrf.mxu0
        %v990 = vadd.f32 0.0, %v989
        %v991 = vpop.f32.mrf.mxu0
        %992 = vmatprep.mubr.bf16.mxu0 0
        %993 = vmatmul.mubr.bf16.gmra.mxu0 %v950
        %v994 = vpop.f32.mrf.mxu0
        %v995 = vadd.f32 0.0, %v994
        %v996 = vpop.f32.mrf.mxu0
        %v997 = vpop.f32.mrf.mxu0
        %v998 = vadd.f32 0.0, %v997
        %v999 = vpop.f32.mrf.mxu0
        %1000 = vdwg.mxu0
        %1005 = vrot.lane.b32.xlu0 %v637, 16
        %v1006 = vpop.permute.xlu0 %1005
        %1007 = vrot.lane.b32.xlu0 %v640, 16
        %v1008 = vpop.permute.xlu0 %1007
        %1009 = vrot.lane.b32.xlu0 %v645, 16
        %v1010 = vpop.permute.xlu0 %1009
        %1011 = vrot.lane.b32.xlu0 %v648, 16
        %v1012 = vpop.permute.xlu0 %1011
        %1021 = vrot.lane.b32.xlu0 %v812, 32
        %v1022 = vpop.permute.xlu0 %1021
        %1023 = vrot.lane.b32.xlu0 %v815, 32
        %v1024 = vpop.permute.xlu0 %1023
        %1025 = vrot.lane.b32.xlu0 %v820, 32
        %v1026 = vpop.permute.xlu0 %1025
        %1027 = vrot.lane.b32.xlu0 %v823, 32
        %v1028 = vpop.permute.xlu0 %1027
        %1037 = vrot.lane.b32.xlu0 %v987, 48
        %v1038 = vpop.permute.xlu0 %1037
        %1039 = vrot.lane.b32.xlu0 %v990, 48
        %v1040 = vpop.permute.xlu0 %1039
        %1041 = vrot.lane.b32.xlu0 %v995, 48
        %v1042 = vpop.permute.xlu0 %1041
        %1043 = vrot.lane.b32.xlu0 %v998, 48
        %v1044 = vpop.permute.xlu0 %1043
        %v1049 = vsel %vm301, %v462, %v1006
        %v1050 = vsel %vm301, %v465, %v1008
        %v1051 = vsel %vm301, %v470, %v1010
        %v1052 = vsel %vm301, %v473, %v1012
        %v1053 = vsel %vm363, %v1049, %v1022
        %v1054 = vsel %vm363, %v1050, %v1024
        %v1055 = vsel %vm363, %v1051, %v1026
        %v1056 = vsel %vm363, %v1052, %v1028
        %vm1057 = vcmask 392192
        %v1058 = vsel %vm1057, %v1053, %v1038
        %v1059 = vsel %vm1057, %v1054, %v1040
        %v1060 = vsel %vm1057, %v1055, %v1042
        %v1061 = vsel %vm1057, %v1056, %v1044
        %v1062 = vpack.c.bf16 %v1059, %v1058
        %v1063 = vpack.c.bf16 %v1061, %v1060
        %v1064 = vld [vmem:[%s3] sm:$0xff]
        %v1065 = vld [vmem:[%s3 + $0x8] sm:$0xff]
        %v1066 = vld [vmem:[%s3 + $0x10] sm:$0xff]
        %v1067 = vld [vmem:[%s3 + $0x18] sm:$0xff]
        %v1068 = vld [vmem:[%s3 + $0x20] sm:$0xff]
        %v1069 = vld [vmem:[%s3 + $0x28] sm:$0xff]
        %v1070 = vld [vmem:[%s3 + $0x30] sm:$0xff]
        %v1071 = vld [vmem:[%s3 + $0x38] sm:$0xff]
        %v1072 = vpack.c.bf16 %v1065, %v1064
        %v1073 = vpack.c.bf16 %v1067, %v1066
        %v1074 = vpack.c.bf16 %v1069, %v1068
        %v1075 = vpack.c.bf16 %v1071, %v1070
        %v1076 = vld [vmem:[%s4] sm:$0x1]
        %v1078 = vlaneseq
        %v1079 = vshrl.u32 %v1078, 7
        %v1080 = vsub.s32 0, %v1079
        %v1081 = vrot.slane %v1076, %v1080
        %vm1083 = vcmask 523264
        %v1085 = vsel %vm1083, %v1062, 0
        %v1088 = vsel %vm1083, %v1063, 0
        %1090 = vmatprep.subr.bf16.mxu0 0
        %1091 = vmatpush1.bf16.msra.mxu0 0
        %1092 = vmatprep.subr.bf16.mxu0 0
        %1093 = vmatpush1.bf16.msra.mxu0 0
        %1094 = vmatprep.subr.bf16.mxu0 0
        %1095 = vmatpush1.bf16.msra.mxu0 0
        %1096 = vmatprep.subr.bf16.mxu0 0
        %1097 = vmatpush1.bf16.msra.mxu0 0
        %1098 = vmatprep.subr.bf16.mxu0 0
        %1099 = vmatpush1.bf16.msra.mxu0 %v1075
        %1100 = vmatprep.subr.bf16.mxu0 0
        %1101 = vmatpush1.bf16.msra.mxu0 %v1074
        %1102 = vmatprep.subr.bf16.mxu0 0
        %1103 = vmatpush1.bf16.msra.mxu0 %v1073
        %1104 = vmatprep.subr.bf16.mxu0 0
        %1105 = vmatpush1.bf16.msra.mxu0 %v1072
        %1106 = vmatprep.subr.bf16.mxu0 0
        %1107 = vmatpush2.bf16.msra.mxu0 0
        %1108 = vmatprep.subr.bf16.mxu0 0
        %1109 = vmatpush2.bf16.msra.mxu0 0
        %1110 = vmatprep.subr.bf16.mxu0 0
        %1111 = vmatpush2.bf16.msra.mxu0 0
        %1112 = vmatprep.subr.bf16.mxu0 0
        %1113 = vmatpush2.bf16.msra.mxu0 0
        %1114 = vmatprep.subr.bf16.mxu0 0
        %1115 = vmatpush2.bf16.msra.mxu0 0
        %1116 = vmatprep.subr.bf16.mxu0 0
        %1117 = vmatpush2.bf16.msra.mxu0 0
        %1118 = vmatprep.subr.bf16.mxu0 0
        %1119 = vmatpush2.bf16.msra.mxu0 0
        %1120 = vmatprep.subr.bf16.mxu0 0
        %1121 = vmatpush2.bf16.msra.mxu0 0
        %1122 = vmatprep.mubr.bf16.mxu0 0
        %1123 = vmatmul.mubr.bf16.gmra.mxu0 %v1085
        %v1124 = vpop.f32.mrf.mxu0
        %v1125 = vadd.f32 %v1081, %v1124
        %v1126 = vpop.f32.mrf.mxu0
        %v1127 = vpop.f32.mrf.mxu0
        %v1128 = vadd.f32 %v1081, %v1127
        %v1129 = vpop.f32.mrf.mxu0
        %1130 = vmatprep.mubr.bf16.mxu0 0
        %1131 = vmatmul.mubr.bf16.gmra.mxu0 %v1088
        %v1132 = vpop.f32.mrf.mxu0
        %v1133 = vadd.f32 %v1081, %v1132
        %v1134 = vpop.f32.mrf.mxu0
        %v1135 = vpop.f32.mrf.mxu0
        %v1136 = vadd.f32 %v1081, %v1135
        %v1137 = vpop.f32.mrf.mxu0
        %1138 = vdwg.mxu0
        %1139 = vst.msk [vmem:[%s247] sm:$0xff] %vm1083, %v1125
        %1140 = vst.msk [vmem:[%s247 + $0x8] sm:$0xff] %vm1083, %v1128
        %1141 = vst.msk [vmem:[%s247 + $0x10] sm:$0xff] %vm1083, %v1133
        %1142 = vst.msk [vmem:[%s247 + $0x18] sm:$0xff] %vm1083, %v1136
        %s1143 = sand.u32 %s147, 1
        %s1144 = scalar_lea.sflag [#allocation3], %s1143
        %s1145 = sand.u32 %s147, 1
        %s1146 = smul.addr %s1145, 32
        %s1147 = scalar_lea.vmem [#allocation2], %s1146
        // Predicated region
        $region41: #{multi_head_attention.3} parent=39 // pred_check
          %p1148 = pneg %p157
        $region42: #{multi_head_attention.3} parent=39 // pred_check_branch
          %1150 = sbr.rel (%p1148) target = $region44
        $region43: #{multi_head_attention.3} parent=39 // pred_region
          %s1152 = ssub.s32 512, 512
          %1153 = vsyncadd %s1144, %s1152
          %s1154 = smul.addr %s19, 4
          %s1155 = smul.addr %s1154, 128
          %s1156 = scalar_lea.hbm %s5, %s1155
          %s1157 = sshll.u32 %s1147, 4
          %s1158 = int_to_ptr.vmem [resolvable:$true] %s1157
          %1163 = dma.vmem_to_hbm [thread:$0]  %s1158, 512, %s1156, %s1144, 128, 128, 8
        $region44: #{multi_head_attention.3} parent=39 // pred_fallthru
          _
      $region40: #{multi_head_attention.3} parent=5 // pred_fallthru
        _
      %p1164 = scmp.le.s32.totalorder 2, %s14
      // Predicated region
      $region45: #{multi_head_attention.3} parent=5 // pred_check
        %p1165 = pneg %p1164
      $region46: #{multi_head_attention.3} parent=5 // pred_check_branch
        %1167 = sbr.rel (%p1165) target = $region48
      $region47: #{multi_head_attention.3} parent=5 // pred_region
        %s1168 = ssub.s32 %s14, 2
        // Predicated region
        $region49: #{multi_head_attention.3} parent=47 // pred_check
          %p1169 = pneg %p163
        $region50: #{multi_head_attention.3} parent=47 // pred_check_branch
          %1171 = sbr.rel (%p1169) target = $region52
        $region51: #{multi_head_attention.3} parent=47 // pred_region
          %s1172 = sand.u32 %s148, 1
          %s1173 = scalar_lea.sflag [#allocation3], %s1172
          %s1174 = sand.u32 %s148, 1
          %s1175 = smul.addr %s1174, 32
          %s1176 = scalar_lea.vmem [#allocation2], %s1175
          %1177 = dma.done %s1173, 512
        $region52: #{multi_head_attention.3} parent=47 // pred_fallthru
          _
      $region48: #{multi_head_attention.3} parent=5 // pred_fallthru
        _
    $region6: #{multi_head_attention.3} parent=1 // loop_footer
      %s18 = sadd.s32 1, %s14
    $region7: #{multi_head_attention.3} parent=1 // loop_footer_branch
      %13 = sbr.rel target = $region3
    $region8: #{multi_head_attention.3} parent=1 // loop_exit
      _
    %1178 = vsyncpa [#allocation3], 1
    %s1179 = scalar_lea.sflag [#allocation3], 1
    %1180 = vsyncpa %s1179, 1

</llo_original>
